<compile_context>
chip_gen: v6e
topology: v6e:2x2x1
jax: 0.10.0
libtpu: 0.0.40
codegen_flags: <defaults>
</compile_context>

<pallas_src>
import functools

import jax
import jax.numpy as jnp
import numpy as np
from jax import lax
from jax.experimental import pallas as pl
from jax.experimental.pallas import tpu as pltpu


# ---------------------------------------------------------------------------
# Pallas kernel: one batch element per grid step
# ---------------------------------------------------------------------------
def conv_lstm_linear_kernel(
    lens_ref,                                   # scalar prefetch (SMEM, (B,))
    x_ref, w1_ref, b1_ref, w2_ref, b2_ref,      # conv stack
    wihf_ref, whhf_ref, bf_ref,                 # LSTM forward direction
    wihr_ref, whhr_ref, br_ref,                 # LSTM reverse direction
    wdT_ref, bd_ref,                            # dense
    o_ref,                                      # output block (1, out_dim, T)
    gf_buf, gr_buf, outf_buf, outr_buf,         # VMEM scratch
    *, t_len, hidden):
    T = t_len
    H = hidden
    seq_len = lens_ref[pl.program_id(0)]

    # ---- hoisted masks, reused by both conv layers ----
    tcol = lax.broadcasted_iota(jnp.int32, (1, T), 1)
    left_ok = tcol >= 1               # position t-1 exists
    right_ok = tcol < (T - 1)         # position t+1 exists
    len_ok = tcol < seq_len           # valid (non-pad) positions

    def silu(v):
        return v * (1.0 / (1.0 + jnp.exp(-v)))

    def sigm(v):
        return 1.0 / (1.0 + jnp.exp(-v))

    def stack_taps(h):
        # rows ordered tap k=0 (x[t-1]), k=1 (x[t]), k=2 (x[t+1]) to match the
        # (Cout, 3*Cin) flattened weight; center tap needs no roll/mask.
        hm1 = jnp.where(left_ok, pltpu.roll(h, shift=1, axis=1), 0.0)
        hp1 = jnp.where(right_ok, pltpu.roll(h, shift=T - 1, axis=1), 0.0)
        return jnp.concatenate([hm1, h, hp1], axis=0)

    # ---- conv stack (fused-tap matmuls) ----
    x = jnp.where(len_ok, x_ref[0], 0.0)                            # (Cin, T)
    h = jnp.dot(w1_ref[...], stack_taps(x),
                preferred_element_type=jnp.float32) + b1_ref[...]
    h = jnp.where(len_ok, silu(h), 0.0)
    h = jnp.dot(w2_ref[...], stack_taps(h),
                preferred_element_type=jnp.float32) + b2_ref[...]
    h = jnp.where(len_ok, silu(h), 0.0)                             # (C, T)

    # ---- BiLSTM: input projections for all T as two big matmuls ----
    h_tm = h.T                                                      # (T, C)
    gf_buf[...] = jnp.dot(h_tm, wihf_ref[...],
                          preferred_element_type=jnp.float32) + bf_ref[...]
    gr_buf[...] = jnp.dot(h_tm, wihr_ref[...],
                          preferred_element_type=jnp.float32) + br_ref[...]

    whh_f = whhf_ref[...]                                           # (H, 4H)
    whh_r = whhr_ref[...]

    def gate_step(g_row, c_prev):
        i_g = sigm(g_row[:, 0:H])
        f_g = sigm(g_row[:, H:2 * H])
        g_g = jnp.tanh(g_row[:, 2 * H:3 * H])
        o_g = sigm(g_row[:, 3 * H:4 * H])
        c_new = f_g * c_prev + i_g * g_g
        h_new = o_g * jnp.tanh(c_new)
        return h_new, c_new

    zero = jnp.zeros((1, H), jnp.float32)

    # forward direction: outputs past the valid length are zeroed
    def fwd_step(t, carry):
        h_prev, c_prev = carry
        g_row = gf_buf[pl.ds(t, 1), :] + jnp.dot(
            h_prev, whh_f, preferred_element_type=jnp.float32)
        h_new, c_new = gate_step(g_row, c_prev)
        outf_buf[pl.ds(t, 1), :] = jnp.where(t < seq_len, h_new, 0.0)
        return (h_new, c_new)

    lax.fori_loop(0, T, fwd_step, (zero, zero))

    # reverse direction: state held at zero while t >= seq_len so that the
    # recurrence effectively starts fresh at t = seq_len - 1 (packed semantics)
    def bwd_step(i, carry):
        h_prev, c_prev = carry
        t = T - 1 - i
        g_row = gr_buf[pl.ds(t, 1), :] + jnp.dot(
            h_prev, whh_r, preferred_element_type=jnp.float32)
        h_new, c_new = gate_step(g_row, c_prev)
        valid = t < seq_len
        h_new = jnp.where(valid, h_new, 0.0)
        c_new = jnp.where(valid, c_new, 0.0)
        outr_buf[pl.ds(t, 1), :] = h_new
        return (h_new, c_new)

    lax.fori_loop(0, T, bwd_step, (zero, zero))

    # ---- dense: (T,H)@(H,out) + (T,H)@(H,out), then one transpose to (out,T)
    y_tm = (jnp.dot(outf_buf[...], wdT_ref[0:H, :],
                    preferred_element_type=jnp.float32) +
            jnp.dot(outr_buf[...], wdT_ref[H:2 * H, :],
                    preferred_element_type=jnp.float32) +
            bd_ref[...])                                            # (T, out)
    o_ref[0] = y_tm.T.astype(o_ref.dtype)


# ---------------------------------------------------------------------------
# Wrapper: parameter re-layout + pallas_call plumbing
# ---------------------------------------------------------------------------
def conv_lstm_linear(x, lens, params):
    B, c_in, T = x.shape
    c_mid, _, K = params["w1"].shape
    assert K == 3, "kernel hardcodes kernel_size=3 (module default)"
    H = params["w_hh_f"].shape[1]
    out_dim = params["wd"].shape[0]

    # flatten conv weights to (Cout, K*Cin) matching the tap-stacked operand
    w1f = jnp.transpose(params["w1"], (0, 2, 1)).reshape(c_mid, K * c_in)
    b1c = params["b1"][:, None]
    w2f = jnp.transpose(params["w2"], (0, 2, 1)).reshape(c_mid, K * c_mid)
    b2c = params["b2"][:, None]
    # LSTM weights pre-transposed for time-major matmuls; biases combined
    wihf = params["w_ih_f"].T                       # (C, 4H)
    whhf = params["w_hh_f"].T                       # (H, 4H)
    bf = (params["b_ih_f"] + params["b_hh_f"])[None, :]
    wihr = params["w_ih_r"].T
    whhr = params["w_hh_r"].T
    br = (params["b_ih_r"] + params["b_hh_r"])[None, :]
    wdT = params["wd"].T                            # (2H, out_dim)
    bdr = params["bd"][None, :]                     # (1, out_dim)

    lens_i32 = lens.astype(jnp.int32)

    def wspec(a):
        nd = a.ndim
        return pl.BlockSpec(a.shape, lambda b, lens_ref, _nd=nd: (0,) * _nd)

    kernel = functools.partial(conv_lstm_linear_kernel, t_len=T, hidden=H)

    grid_spec = pltpu.PrefetchScalarGridSpec(
        num_scalar_prefetch=1,
        grid=(B,),
        in_specs=[
            pl.BlockSpec((1, c_in, T), lambda b, lens_ref: (b, 0, 0)),   # x
            wspec(w1f), wspec(b1c), wspec(w2f), wspec(b2c),
            wspec(wihf), wspec(whhf), wspec(bf),
            wspec(wihr), wspec(whhr), wspec(br),
            wspec(wdT), wspec(bdr),
        ],
        out_specs=pl.BlockSpec((1, out_dim, T), lambda b, lens_ref: (b, 0, 0)),
        scratch_shapes=[
            pltpu.VMEM((T, 4 * H), jnp.float32),    # fwd input-gate projections
            pltpu.VMEM((T, 4 * H), jnp.float32),    # bwd input-gate projections
            pltpu.VMEM((T, H), jnp.float32),        # fwd hidden outputs
            pltpu.VMEM((T, H), jnp.float32),        # bwd hidden outputs
        ],
    )

    return pl.pallas_call(
        kernel,
        out_shape=jax.ShapeDtypeStruct((B, out_dim, T), x.dtype),
        grid_spec=grid_spec,
        compiler_params=pltpu.CompilerParams(
            dimension_semantics=("parallel",)),
    )(lens_i32, x, w1f, b1c, w2f, b2c, wihf, whhf, bf, wihr, whhr, br, wdT, bdr)


# ---------------------------------------------------------------------------
# Pure-JAX reference (mirrors the PyTorch forward) for correctness checking
# ---------------------------------------------------------------------------
def reference(x, lens, params):
    B, _, T = x.shape
    H = params["w_hh_f"].shape[1]
    hp = lax.Precision.HIGHEST

    tcol = jnp.arange(T)
    len_mask = tcol[None, None, :] < lens[:, None, None]      # (B, 1, T)

    def mask(h):
        return jnp.where(len_mask, h, 0.0)

    def silu(v):
        return v * (1.0 / (1.0 + jnp.exp(-v)))

    def sigm(v):
        return 1.0 / (1.0 + jnp.exp(-v))

    def conv1d(h, w, b):
        y = lax.conv_general_dilated(
            h, w, (1,), "SAME",
            dimension_numbers=("NCH", "OIH", "NCH"), precision=hp)
        return y + b[None, :, None]

    h = mask(x)
    h = mask(silu(conv1d(h, params["w1"], params["b1"])))
    h = mask(silu(conv1d(h, params["w2"], params["b2"])))

    xt = jnp.transpose(h, (0, 2, 1))                          # (B, T, C)

    def run_lstm(w_ih, w_hh, b_ih, b_hh, reverse):
        b_all = b_ih + b_hh

        def step(carry, inp):
            h_prev, c_prev = carry
            x_t, t = inp
            g = (jnp.dot(x_t, w_ih.T, precision=hp) +
                 jnp.dot(h_prev, w_hh.T, precision=hp) + b_all)
            i_g = sigm(g[:, 0:H]); f_g = sigm(g[:, H:2 * H])
            g_g = jnp.tanh(g[:, 2 * H:3 * H]); o_g = sigm(g[:, 3 * H:4 * H])
            c_new = f_g * c_prev + i_g * g_g
            h_new = o_g * jnp.tanh(c_new)
            valid = (t < lens)[:, None]
            if reverse:
                h_out = jnp.where(valid, h_new, 0.0)
                c_out = jnp.where(valid, c_new, 0.0)
                return (h_out, c_out), h_out
            return (h_new, c_new), jnp.where(valid, h_new, 0.0)

        init = (jnp.zeros((B, H), jnp.float32), jnp.zeros((B, H), jnp.float32))
        xs = (jnp.transpose(xt, (1, 0, 2)), jnp.arange(T))
        _, ys = lax.scan(step, init, xs, reverse=reverse)
        return jnp.transpose(ys, (1, 0, 2))                   # (B, T, H)

    out_f = run_lstm(params["w_ih_f"], params["w_hh_f"],
                     params["b_ih_f"], params["b_hh_f"], reverse=False)
    out_r = run_lstm(params["w_ih_r"], params["w_hh_r"],
                     params["b_ih_r"], params["b_hh_r"], reverse=True)
    lstm_out = jnp.concatenate([out_f, out_r], axis=-1)       # (B, T, 2H)

    y = jnp.einsum("bth,oh->bto", lstm_out, params["wd"],
                   precision=hp) + params["bd"][None, None, :]
    return jnp.transpose(y, (0, 2, 1))                        # (B, out, T)


if __name__ == "__main__":
    # Small shapes consistent with the module (scaled-down n_channels):
    # B=2, in_dim=16, n_channels=16 (bilstm hidden = 8/dir), out_dim=8,
    # T=128 (lane-dense), kernel_size=3, lens = [128, 96].
    B, in_dim, n_channels, out_dim, T, K = 2, 16, 16, 8, 128, 3
    H = n_channels // 2

    key = jax.random.PRNGKey(0)
    ks = jax.random.split(key, 16)
    f32 = jnp.float32

    def rnd(k, shape, scale):
        return scale * jax.random.normal(k, shape, dtype=f32)

    x = jax.random.normal(ks[0], (B, in_dim, T), dtype=f32)
    lens = jnp.array([128, 96], dtype=jnp.int32)

    params = {
        # weight-normed convs; effective weight == raw weight at synthetic init
        "w1": rnd(ks[1], (n_channels, in_dim, K), 0.3),
        "b1": rnd(ks[2], (n_channels,), 0.1),
        "w2": rnd(ks[3], (n_channels, n_channels, K), 0.3),
        "b2": rnd(ks[4], (n_channels,), 0.1),
        # BiLSTM (spectral_norm folded into effective weight_hh)
        "w_ih_f": rnd(ks[5], (4 * H, n_channels), 0.3),
        "w_hh_f": rnd(ks[6], (4 * H, H), 0.3),
        "b_ih_f": rnd(ks[7], (4 * H,), 0.1),
        "b_hh_f": rnd(ks[8], (4 * H,), 0.1),
        "w_ih_r": rnd(ks[9], (4 * H, n_channels), 0.3),
        "w_hh_r": rnd(ks[10], (4 * H, H), 0.3),
        "b_ih_r": rnd(ks[11], (4 * H,), 0.1),
        "b_hh_r": rnd(ks[12], (4 * H,), 0.1),
        # dense
        "wd": rnd(ks[13], (out_dim, 2 * H), 0.3),
        "bd": rnd(ks[14], (out_dim,), 0.1),
    }

    out = conv_lstm_linear(x, lens, params)
    out = jax.block_until_ready(out)

    ref = jax.block_until_ready(reference(x, lens, params))
    np.testing.assert_allclose(np.asarray(out), np.asarray(ref),
                               rtol=2e-3, atol=2e-3)
    print("KERNEL_OK")
</pallas_src>

<mosaic_0001>
module attributes {stable_mosaic.version = 11 : i64} {
  func.func @conv_lstm_linear_kernel(%arg0: i32, %arg1: memref<2xi32, #tpu.memory_space<smem>>, %arg2: memref<1x16x128xf32, #tpu.memory_space<vmem>>, %arg3: memref<16x48xf32, #tpu.memory_space<vmem>>, %arg4: memref<16x1xf32, #tpu.memory_space<vmem>>, %arg5: memref<16x48xf32, #tpu.memory_space<vmem>>, %arg6: memref<16x1xf32, #tpu.memory_space<vmem>>, %arg7: memref<16x32xf32, #tpu.memory_space<vmem>>, %arg8: memref<8x32xf32, #tpu.memory_space<vmem>>, %arg9: memref<1x32xf32, #tpu.memory_space<vmem>>, %arg10: memref<16x32xf32, #tpu.memory_space<vmem>>, %arg11: memref<8x32xf32, #tpu.memory_space<vmem>>, %arg12: memref<1x32xf32, #tpu.memory_space<vmem>>, %arg13: memref<16x8xf32, #tpu.memory_space<vmem>>, %arg14: memref<1x8xf32, #tpu.memory_space<vmem>>, %arg15: memref<1x8x128xf32, #tpu.memory_space<vmem>>, %arg16: memref<128x32xf32, #tpu.memory_space<vmem>>, %arg17: memref<128x32xf32, #tpu.memory_space<vmem>>, %arg18: memref<128x8xf32, #tpu.memory_space<vmem>>, %arg19: memref<128x8xf32, #tpu.memory_space<vmem>>) attributes {dimension_semantics = [#tpu.dimension_semantics<parallel>], iteration_bounds = array<i64: 2>, scalar_prefetch = 1 : i64, scratch_operands = 4 : i64, tpu.core_type = #tpu.core_type<tc>, window_params = [{transform_indices = @transform_0, window_bounds = array<i64: 1, 16, 128>}, {pipeline_mode = #tpu.pipeline_mode<synchronous>, transform_indices = @transform_1, window_bounds = array<i64: 16, 48>}, {pipeline_mode = #tpu.pipeline_mode<synchronous>, transform_indices = @transform_2, window_bounds = array<i64: 16, 1>}, {pipeline_mode = #tpu.pipeline_mode<synchronous>, transform_indices = @transform_3, window_bounds = array<i64: 16, 48>}, {pipeline_mode = #tpu.pipeline_mode<synchronous>, transform_indices = @transform_4, window_bounds = array<i64: 16, 1>}, {pipeline_mode = #tpu.pipeline_mode<synchronous>, transform_indices = @transform_5, window_bounds = array<i64: 16, 32>}, {pipeline_mode = #tpu.pipeline_mode<synchronous>, transform_indices = @transform_6, window_bounds = array<i64: 8, 32>}, {pipeline_mode = #tpu.pipeline_mode<synchronous>, transform_indices = @transform_7, window_bounds = array<i64: 1, 32>}, {pipeline_mode = #tpu.pipeline_mode<synchronous>, transform_indices = @transform_8, window_bounds = array<i64: 16, 32>}, {pipeline_mode = #tpu.pipeline_mode<synchronous>, transform_indices = @transform_9, window_bounds = array<i64: 8, 32>}, {pipeline_mode = #tpu.pipeline_mode<synchronous>, transform_indices = @transform_10, window_bounds = array<i64: 1, 32>}, {pipeline_mode = #tpu.pipeline_mode<synchronous>, transform_indices = @transform_11, window_bounds = array<i64: 16, 8>}, {pipeline_mode = #tpu.pipeline_mode<synchronous>, transform_indices = @transform_12, window_bounds = array<i64: 1, 8>}, {transform_indices = @transform_13, window_bounds = array<i64: 1, 8, 128>}]} {
    %0 = arith.index_cast %arg0 : i32 to index
    %1 = memref.load %arg1[%0] : memref<2xi32, #tpu.memory_space<smem>>
    %2 = tpu.iota {dimensions = array<i32: 1>} : vector<1x128xi32>
    %c1_i32 = arith.constant 1 : i32
    %3 = vector.broadcast %c1_i32 : i32 to vector<1x128xi32>
    %4 = arith.cmpi sge, %2, %3 : vector<1x128xi32>
    %c127_i32 = arith.constant 127 : i32
    %5 = vector.broadcast %c127_i32 : i32 to vector<1x128xi32>
    %6 = arith.cmpi slt, %2, %5 : vector<1x128xi32>
    %7 = vector.broadcast %1 : i32 to vector<1x128xi32>
    %8 = arith.cmpi slt, %2, %7 : vector<1x128xi32>
    %c0 = arith.constant 0 : index
    %c0_0 = arith.constant 0 : index
    %c0_1 = arith.constant 0 : index
    %9 = vector.load %arg2[%c0, %c0_0, %c0_1] : memref<1x16x128xf32, #tpu.memory_space<vmem>>, vector<1x16x128xf32>
    %10 = vector.shape_cast %9 : vector<1x16x128xf32> to vector<16x128xf32>
    %cst = arith.constant 0.000000e+00 : f32
    %11 = vector.shape_cast %8 : vector<1x128xi1> to vector<1x128xi1>
    %12 = vector.broadcast %11 : vector<1x128xi1> to vector<16x128xi1>
    %13 = vector.broadcast %cst : f32 to vector<16x128xf32>
    %14 = arith.select %12, %10, %13 : vector<16x128xi1>, vector<16x128xf32>
    %c0_2 = arith.constant 0 : index
    %c0_3 = arith.constant 0 : index
    %15 = vector.load %arg3[%c0_2, %c0_3] : memref<16x48xf32, #tpu.memory_space<vmem>>, vector<16x48xf32>
    %c1_i32_4 = arith.constant 1 : i32
    %16 = tpu.dynamic_rotate %14 by %c1_i32_4 dim 1 : vector<16x128xf32>, i32 -> vector<16x128xf32>
    %cst_5 = arith.constant 0.000000e+00 : f32
    %17 = vector.shape_cast %4 : vector<1x128xi1> to vector<1x128xi1>
    %18 = vector.broadcast %17 : vector<1x128xi1> to vector<16x128xi1>
    %19 = vector.broadcast %cst_5 : f32 to vector<16x128xf32>
    %20 = arith.select %18, %16, %19 : vector<16x128xi1>, vector<16x128xf32>
    %c127_i32_6 = arith.constant 127 : i32
    %21 = tpu.dynamic_rotate %14 by %c127_i32_6 dim 1 : vector<16x128xf32>, i32 -> vector<16x128xf32>
    %cst_7 = arith.constant 0.000000e+00 : f32
    %22 = vector.shape_cast %6 : vector<1x128xi1> to vector<1x128xi1>
    %23 = vector.broadcast %22 : vector<1x128xi1> to vector<16x128xi1>
    %24 = vector.broadcast %cst_7 : f32 to vector<16x128xf32>
    %25 = arith.select %23, %21, %24 : vector<16x128xi1>, vector<16x128xf32>
    %26 = tpu.concatenate %20, %14, %25 in 0 : vector<16x128xf32>, vector<16x128xf32>, vector<16x128xf32> -> vector<48x128xf32>
    %cst_8 = arith.constant dense<0.000000e+00> : vector<16x128xf32>
    %27 = tpu.matmul %15, %26, %cst_8 {dimension_numbers = #tpu.dot_dimension_numbers<[1], [0], [0], [1], [0, 0, 1, 1], [], []>} : vector<16x48xf32>, vector<48x128xf32>, vector<16x128xf32> -> vector<16x128xf32>
    %c0_9 = arith.constant 0 : index
    %c0_10 = arith.constant 0 : index
    %28 = vector.load %arg4[%c0_9, %c0_10] : memref<16x1xf32, #tpu.memory_space<vmem>>, vector<16x1xf32>
    %29 = vector.broadcast %28 : vector<16x1xf32> to vector<16x128xf32>
    %30 = arith.addf %27, %29 : vector<16x128xf32>
    %cst_11 = arith.constant 0.000000e+00 : f32
    %31 = vector.broadcast %cst_11 : f32 to vector<16x128xf32>
    %32 = arith.subf %31, %30 : vector<16x128xf32>
    %33 = math.exp %32 : vector<16x128xf32>
    %cst_12 = arith.constant 1.000000e+00 : f32
    %34 = vector.broadcast %cst_12 : f32 to vector<16x128xf32>
    %35 = arith.addf %34, %33 : vector<16x128xf32>
    %cst_13 = arith.constant 1.000000e+00 : f32
    %36 = vector.broadcast %cst_13 : f32 to vector<16x128xf32>
    %37 = arith.divf %36, %35 : vector<16x128xf32>
    %38 = arith.mulf %30, %37 : vector<16x128xf32>
    %cst_14 = arith.constant 0.000000e+00 : f32
    %39 = vector.shape_cast %8 : vector<1x128xi1> to vector<1x128xi1>
    %40 = vector.broadcast %39 : vector<1x128xi1> to vector<16x128xi1>
    %41 = vector.broadcast %cst_14 : f32 to vector<16x128xf32>
    %42 = arith.select %40, %38, %41 : vector<16x128xi1>, vector<16x128xf32>
    %c0_15 = arith.constant 0 : index
    %c0_16 = arith.constant 0 : index
    %43 = vector.load %arg5[%c0_15, %c0_16] : memref<16x48xf32, #tpu.memory_space<vmem>>, vector<16x48xf32>
    %c1_i32_17 = arith.constant 1 : i32
    %44 = tpu.dynamic_rotate %42 by %c1_i32_17 dim 1 : vector<16x128xf32>, i32 -> vector<16x128xf32>
    %cst_18 = arith.constant 0.000000e+00 : f32
    %45 = vector.shape_cast %4 : vector<1x128xi1> to vector<1x128xi1>
    %46 = vector.broadcast %45 : vector<1x128xi1> to vector<16x128xi1>
    %47 = vector.broadcast %cst_18 : f32 to vector<16x128xf32>
    %48 = arith.select %46, %44, %47 : vector<16x128xi1>, vector<16x128xf32>
    %c127_i32_19 = arith.constant 127 : i32
    %49 = tpu.dynamic_rotate %42 by %c127_i32_19 dim 1 : vector<16x128xf32>, i32 -> vector<16x128xf32>
    %cst_20 = arith.constant 0.000000e+00 : f32
    %50 = vector.shape_cast %6 : vector<1x128xi1> to vector<1x128xi1>
    %51 = vector.broadcast %50 : vector<1x128xi1> to vector<16x128xi1>
    %52 = vector.broadcast %cst_20 : f32 to vector<16x128xf32>
    %53 = arith.select %51, %49, %52 : vector<16x128xi1>, vector<16x128xf32>
    %54 = tpu.concatenate %48, %42, %53 in 0 : vector<16x128xf32>, vector<16x128xf32>, vector<16x128xf32> -> vector<48x128xf32>
    %cst_21 = arith.constant dense<0.000000e+00> : vector<16x128xf32>
    %55 = tpu.matmul %43, %54, %cst_21 {dimension_numbers = #tpu.dot_dimension_numbers<[1], [0], [0], [1], [0, 0, 1, 1], [], []>} : vector<16x48xf32>, vector<48x128xf32>, vector<16x128xf32> -> vector<16x128xf32>
    %c0_22 = arith.constant 0 : index
    %c0_23 = arith.constant 0 : index
    %56 = vector.load %arg6[%c0_22, %c0_23] : memref<16x1xf32, #tpu.memory_space<vmem>>, vector<16x1xf32>
    %57 = vector.broadcast %56 : vector<16x1xf32> to vector<16x128xf32>
    %58 = arith.addf %55, %57 : vector<16x128xf32>
    %cst_24 = arith.constant 0.000000e+00 : f32
    %59 = vector.broadcast %cst_24 : f32 to vector<16x128xf32>
    %60 = arith.subf %59, %58 : vector<16x128xf32>
    %61 = math.exp %60 : vector<16x128xf32>
    %cst_25 = arith.constant 1.000000e+00 : f32
    %62 = vector.broadcast %cst_25 : f32 to vector<16x128xf32>
    %63 = arith.addf %62, %61 : vector<16x128xf32>
    %cst_26 = arith.constant 1.000000e+00 : f32
    %64 = vector.broadcast %cst_26 : f32 to vector<16x128xf32>
    %65 = arith.divf %64, %63 : vector<16x128xf32>
    %66 = arith.mulf %58, %65 : vector<16x128xf32>
    %cst_27 = arith.constant 0.000000e+00 : f32
    %67 = vector.shape_cast %8 : vector<1x128xi1> to vector<1x128xi1>
    %68 = vector.broadcast %67 : vector<1x128xi1> to vector<16x128xi1>
    %69 = vector.broadcast %cst_27 : f32 to vector<16x128xf32>
    %70 = arith.select %68, %66, %69 : vector<16x128xi1>, vector<16x128xf32>
    %71 = tpu.transpose %70, [1, 0] : vector<16x128xf32> -> vector<128x16xf32>
    %c0_28 = arith.constant 0 : index
    %c0_29 = arith.constant 0 : index
    %72 = vector.load %arg7[%c0_28, %c0_29] : memref<16x32xf32, #tpu.memory_space<vmem>>, vector<16x32xf32>
    %cst_30 = arith.constant dense<0.000000e+00> : vector<128x32xf32>
    %73 = tpu.matmul %71, %72, %cst_30 {dimension_numbers = #tpu.dot_dimension_numbers<[1], [0], [0], [1], [0, 0, 1, 1], [], []>} : vector<128x16xf32>, vector<16x32xf32>, vector<128x32xf32> -> vector<128x32xf32>
    %c0_31 = arith.constant 0 : index
    %c0_32 = arith.constant 0 : index
    %74 = vector.load %arg9[%c0_31, %c0_32] : memref<1x32xf32, #tpu.memory_space<vmem>>, vector<1x32xf32>
    %75 = vector.broadcast %74 : vector<1x32xf32> to vector<128x32xf32>
    %76 = arith.addf %73, %75 : vector<128x32xf32>
    %c0_33 = arith.constant 0 : index
    %c0_34 = arith.constant 0 : index
    %77 = vector.load %arg16[%c0_33, %c0_34] : memref<128x32xf32, #tpu.memory_space<vmem>>, vector<128x32xf32>
    tpu.vector_store %arg16[%c0_33, %c0_34], %76 {strides = array<i32>} : memref<128x32xf32, #tpu.memory_space<vmem>>, vector<128x32xf32>,
    %c0_35 = arith.constant 0 : index
    %c0_36 = arith.constant 0 : index
    %78 = vector.load %arg10[%c0_35, %c0_36] : memref<16x32xf32, #tpu.memory_space<vmem>>, vector<16x32xf32>
    %cst_37 = arith.constant dense<0.000000e+00> : vector<128x32xf32>
    %79 = tpu.matmul %71, %78, %cst_37 {dimension_numbers = #tpu.dot_dimension_numbers<[1], [0], [0], [1], [0, 0, 1, 1], [], []>} : vector<128x16xf32>, vector<16x32xf32>, vector<128x32xf32> -> vector<128x32xf32>
    %c0_38 = arith.constant 0 : index
    %c0_39 = arith.constant 0 : index
    %80 = vector.load %arg12[%c0_38, %c0_39] : memref<1x32xf32, #tpu.memory_space<vmem>>, vector<1x32xf32>
    %81 = vector.broadcast %80 : vector<1x32xf32> to vector<128x32xf32>
    %82 = arith.addf %79, %81 : vector<128x32xf32>
    %c0_40 = arith.constant 0 : index
    %c0_41 = arith.constant 0 : index
    %83 = vector.load %arg17[%c0_40, %c0_41] : memref<128x32xf32, #tpu.memory_space<vmem>>, vector<128x32xf32>
    tpu.vector_store %arg17[%c0_40, %c0_41], %82 {strides = array<i32>} : memref<128x32xf32, #tpu.memory_space<vmem>>, vector<128x32xf32>,
    %c0_42 = arith.constant 0 : index
    %c0_43 = arith.constant 0 : index
    %84 = vector.load %arg8[%c0_42, %c0_43] : memref<8x32xf32, #tpu.memory_space<vmem>>, vector<8x32xf32>
    %c0_44 = arith.constant 0 : index
    %c0_45 = arith.constant 0 : index
    %85 = vector.load %arg11[%c0_44, %c0_45] : memref<8x32xf32, #tpu.memory_space<vmem>>, vector<8x32xf32>
    %cst_46 = arith.constant 0.000000e+00 : f32
    %86 = vector.broadcast %cst_46 : f32 to vector<1x8xf32>
    %c0_i32 = arith.constant 0 : i32
    %c128_i32 = arith.constant 128 : i32
    %87 = arith.addi %c0_i32, %c128_i32 : i32
    %c1_i32_47 = arith.constant 1 : i32
    %88:2 = scf.for %arg20 = %c0_i32 to %87 step %c1_i32_47 iter_args(%arg21 = %86, %arg22 = %86) -> (vector<1x8xf32>, vector<1x8xf32>)  : i32 {
      %105 = arith.index_cast %arg20 : i32 to index
      %c0_67 = arith.constant 0 : index
      %106 = vector.load %arg16[%105, %c0_67] : memref<128x32xf32, #tpu.memory_space<vmem>>, vector<1x32xf32>
      %cst_68 = arith.constant dense<0.000000e+00> : vector<1x32xf32>
      %107 = tpu.matmul %arg21, %84, %cst_68 {dimension_numbers = #tpu.dot_dimension_numbers<[1], [0], [0], [1], [0, 0, 1, 1], [], []>} : vector<1x8xf32>, vector<8x32xf32>, vector<1x32xf32> -> vector<1x32xf32>
      %108 = arith.addf %106, %107 : vector<1x32xf32>
      %109 = vector.extract_strided_slice %108 {offsets = [0, 0], sizes = [1, 8], strides = [1, 1]} : vector<1x32xf32> to vector<1x8xf32>
      %cst_69 = arith.constant 0.000000e+00 : f32
      %110 = vector.broadcast %cst_69 : f32 to vector<1x8xf32>
      %111 = arith.subf %110, %109 : vector<1x8xf32>
      %112 = math.exp %111 : vector<1x8xf32>
      %cst_70 = arith.constant 1.000000e+00 : f32
      %113 = vector.broadcast %cst_70 : f32 to vector<1x8xf32>
      %114 = arith.addf %113, %112 : vector<1x8xf32>
      %cst_71 = arith.constant 1.000000e+00 : f32
      %115 = vector.broadcast %cst_71 : f32 to vector<1x8xf32>
      %116 = arith.divf %115, %114 : vector<1x8xf32>
      %117 = vector.extract_strided_slice %108 {offsets = [0, 8], sizes = [1, 8], strides = [1, 1]} : vector<1x32xf32> to vector<1x8xf32>
      %cst_72 = arith.constant 0.000000e+00 : f32
      %118 = vector.broadcast %cst_72 : f32 to vector<1x8xf32>
      %119 = arith.subf %118, %117 : vector<1x8xf32>
      %120 = math.exp %119 : vector<1x8xf32>
      %cst_73 = arith.constant 1.000000e+00 : f32
      %121 = vector.broadcast %cst_73 : f32 to vector<1x8xf32>
      %122 = arith.addf %121, %120 : vector<1x8xf32>
      %cst_74 = arith.constant 1.000000e+00 : f32
      %123 = vector.broadcast %cst_74 : f32 to vector<1x8xf32>
      %124 = arith.divf %123, %122 : vector<1x8xf32>
      %125 = vector.extract_strided_slice %108 {offsets = [0, 16], sizes = [1, 8], strides = [1, 1]} : vector<1x32xf32> to vector<1x8xf32>
      %126 = math.tanh %125 : vector<1x8xf32>
      %127 = vector.extract_strided_slice %108 {offsets = [0, 24], sizes = [1, 8], strides = [1, 1]} : vector<1x32xf32> to vector<1x8xf32>
      %cst_75 = arith.constant 0.000000e+00 : f32
      %128 = vector.broadcast %cst_75 : f32 to vector<1x8xf32>
      %129 = arith.subf %128, %127 : vector<1x8xf32>
      %130 = math.exp %129 : vector<1x8xf32>
      %cst_76 = arith.constant 1.000000e+00 : f32
      %131 = vector.broadcast %cst_76 : f32 to vector<1x8xf32>
      %132 = arith.addf %131, %130 : vector<1x8xf32>
      %cst_77 = arith.constant 1.000000e+00 : f32
      %133 = vector.broadcast %cst_77 : f32 to vector<1x8xf32>
      %134 = arith.divf %133, %132 : vector<1x8xf32>
      %135 = arith.mulf %124, %arg22 : vector<1x8xf32>
      %136 = arith.mulf %116, %126 : vector<1x8xf32>
      %137 = arith.addf %135, %136 : vector<1x8xf32>
      %138 = math.tanh %137 : vector<1x8xf32>
      %139 = arith.mulf %134, %138 : vector<1x8xf32>
      %140 = arith.cmpi slt, %arg20, %1 : i32
      %cst_78 = arith.constant 0.000000e+00 : f32
      %141 = vector.broadcast %cst_78 : f32 to vector<1x8xf32>
      %142 = arith.select %140, %139, %141 : vector<1x8xf32>
      %143 = arith.index_cast %arg20 : i32 to index
      %c0_79 = arith.constant 0 : index
      %144 = vector.load %arg18[%143, %c0_79] : memref<128x8xf32, #tpu.memory_space<vmem>>, vector<1x8xf32>
      tpu.vector_store %arg18[%143, %c0_79], %142 {strides = array<i32>} : memref<128x8xf32, #tpu.memory_space<vmem>>, vector<1x8xf32>,
      scf.yield %139, %137 : vector<1x8xf32>, vector<1x8xf32>
    }
    %c128_i32_48 = arith.constant 128 : i32
    %c0_i32_49 = arith.constant 0 : i32
    %c128_i32_50 = arith.constant 128 : i32
    %89 = arith.addi %c0_i32_49, %c128_i32_50 : i32
    %c1_i32_51 = arith.constant 1 : i32
    %90:2 = scf.for %arg20 = %c0_i32_49 to %89 step %c1_i32_51 iter_args(%arg21 = %86, %arg22 = %86) -> (vector<1x8xf32>, vector<1x8xf32>)  : i32 {
      %c127_i32_67 = arith.constant 127 : i32
      %105 = arith.subi %c127_i32_67, %arg20 : i32
      %106 = arith.index_cast %105 : i32 to index
      %c0_68 = arith.constant 0 : index
      %107 = vector.load %arg17[%106, %c0_68] : memref<128x32xf32, #tpu.memory_space<vmem>>, vector<1x32xf32>
      %cst_69 = arith.constant dense<0.000000e+00> : vector<1x32xf32>
      %108 = tpu.matmul %arg21, %85, %cst_69 {dimension_numbers = #tpu.dot_dimension_numbers<[1], [0], [0], [1], [0, 0, 1, 1], [], []>} : vector<1x8xf32>, vector<8x32xf32>, vector<1x32xf32> -> vector<1x32xf32>
      %109 = arith.addf %107, %108 : vector<1x32xf32>
      %110 = vector.extract_strided_slice %109 {offsets = [0, 0], sizes = [1, 8], strides = [1, 1]} : vector<1x32xf32> to vector<1x8xf32>
      %cst_70 = arith.constant 0.000000e+00 : f32
      %111 = vector.broadcast %cst_70 : f32 to vector<1x8xf32>
      %112 = arith.subf %111, %110 : vector<1x8xf32>
      %113 = math.exp %112 : vector<1x8xf32>
      %cst_71 = arith.constant 1.000000e+00 : f32
      %114 = vector.broadcast %cst_71 : f32 to vector<1x8xf32>
      %115 = arith.addf %114, %113 : vector<1x8xf32>
      %cst_72 = arith.constant 1.000000e+00 : f32
      %116 = vector.broadcast %cst_72 : f32 to vector<1x8xf32>
      %117 = arith.divf %116, %115 : vector<1x8xf32>
      %118 = vector.extract_strided_slice %109 {offsets = [0, 8], sizes = [1, 8], strides = [1, 1]} : vector<1x32xf32> to vector<1x8xf32>
      %cst_73 = arith.constant 0.000000e+00 : f32
      %119 = vector.broadcast %cst_73 : f32 to vector<1x8xf32>
      %120 = arith.subf %119, %118 : vector<1x8xf32>
      %121 = math.exp %120 : vector<1x8xf32>
      %cst_74 = arith.constant 1.000000e+00 : f32
      %122 = vector.broadcast %cst_74 : f32 to vector<1x8xf32>
      %123 = arith.addf %122, %121 : vector<1x8xf32>
      %cst_75 = arith.constant 1.000000e+00 : f32
      %124 = vector.broadcast %cst_75 : f32 to vector<1x8xf32>
      %125 = arith.divf %124, %123 : vector<1x8xf32>
      %126 = vector.extract_strided_slice %109 {offsets = [0, 16], sizes = [1, 8], strides = [1, 1]} : vector<1x32xf32> to vector<1x8xf32>
      %127 = math.tanh %126 : vector<1x8xf32>
      %128 = vector.extract_strided_slice %109 {offsets = [0, 24], sizes = [1, 8], strides = [1, 1]} : vector<1x32xf32> to vector<1x8xf32>
      %cst_76 = arith.constant 0.000000e+00 : f32
      %129 = vector.broadcast %cst_76 : f32 to vector<1x8xf32>
      %130 = arith.subf %129, %128 : vector<1x8xf32>
      %131 = math.exp %130 : vector<1x8xf32>
      %cst_77 = arith.constant 1.000000e+00 : f32
      %132 = vector.broadcast %cst_77 : f32 to vector<1x8xf32>
      %133 = arith.addf %132, %131 : vector<1x8xf32>
      %cst_78 = arith.constant 1.000000e+00 : f32
      %134 = vector.broadcast %cst_78 : f32 to vector<1x8xf32>
      %135 = arith.divf %134, %133 : vector<1x8xf32>
      %136 = arith.mulf %125, %arg22 : vector<1x8xf32>
      %137 = arith.mulf %117, %127 : vector<1x8xf32>
      %138 = arith.addf %136, %137 : vector<1x8xf32>
      %139 = math.tanh %138 : vector<1x8xf32>
      %140 = arith.mulf %135, %139 : vector<1x8xf32>
      %141 = arith.cmpi slt, %105, %1 : i32
      %cst_79 = arith.constant 0.000000e+00 : f32
      %142 = vector.broadcast %cst_79 : f32 to vector<1x8xf32>
      %143 = arith.select %141, %140, %142 : vector<1x8xf32>
      %cst_80 = arith.constant 0.000000e+00 : f32
      %144 = vector.broadcast %cst_80 : f32 to vector<1x8xf32>
      %145 = arith.select %141, %138, %144 : vector<1x8xf32>
      %146 = arith.index_cast %105 : i32 to index
      %c0_81 = arith.constant 0 : index
      %147 = vector.load %arg19[%146, %c0_81] : memref<128x8xf32, #tpu.memory_space<vmem>>, vector<1x8xf32>
      tpu.vector_store %arg19[%146, %c0_81], %143 {strides = array<i32>} : memref<128x8xf32, #tpu.memory_space<vmem>>, vector<1x8xf32>,
      scf.yield %143, %145 : vector<1x8xf32>, vector<1x8xf32>
    }
    %c128_i32_52 = arith.constant 128 : i32
    %c0_53 = arith.constant 0 : index
    %c0_54 = arith.constant 0 : index
    %91 = vector.load %arg18[%c0_53, %c0_54] : memref<128x8xf32, #tpu.memory_space<vmem>>, vector<128x8xf32>
    %c0_55 = arith.constant 0 : index
    %c0_56 = arith.constant 0 : index
    %92 = vector.load %arg13[%c0_55, %c0_56] : memref<16x8xf32, #tpu.memory_space<vmem>>, vector<8x8xf32>
    %cst_57 = arith.constant dense<0.000000e+00> : vector<128x8xf32>
    %93 = tpu.matmul %91, %92, %cst_57 {dimension_numbers = #tpu.dot_dimension_numbers<[1], [0], [0], [1], [0, 0, 1, 1], [], []>} : vector<128x8xf32>, vector<8x8xf32>, vector<128x8xf32> -> vector<128x8xf32>
    %c0_58 = arith.constant 0 : index
    %c0_59 = arith.constant 0 : index
    %94 = vector.load %arg19[%c0_58, %c0_59] : memref<128x8xf32, #tpu.memory_space<vmem>>, vector<128x8xf32>
    %c8 = arith.constant 8 : index
    %c0_60 = arith.constant 0 : index
    %95 = vector.load %arg13[%c8, %c0_60] : memref<16x8xf32, #tpu.memory_space<vmem>>, vector<8x8xf32>
    %cst_61 = arith.constant dense<0.000000e+00> : vector<128x8xf32>
    %96 = tpu.matmul %94, %95, %cst_61 {dimension_numbers = #tpu.dot_dimension_numbers<[1], [0], [0], [1], [0, 0, 1, 1], [], []>} : vector<128x8xf32>, vector<8x8xf32>, vector<128x8xf32> -> vector<128x8xf32>
    %97 = arith.addf %93, %96 : vector<128x8xf32>
    %c0_62 = arith.constant 0 : index
    %c0_63 = arith.constant 0 : index
    %98 = vector.load %arg14[%c0_62, %c0_63] : memref<1x8xf32, #tpu.memory_space<vmem>>, vector<1x8xf32>
    %99 = vector.broadcast %98 : vector<1x8xf32> to vector<128x8xf32>
    %100 = arith.addf %97, %99 : vector<128x8xf32>
    %101 = tpu.transpose %100, [1, 0] : vector<128x8xf32> -> vector<8x128xf32>
    %c0_64 = arith.constant 0 : index
    %c0_65 = arith.constant 0 : index
    %c0_66 = arith.constant 0 : index
    %102 = vector.load %arg15[%c0_64, %c0_65, %c0_66] : memref<1x8x128xf32, #tpu.memory_space<vmem>>, vector<1x8x128xf32>
    %103 = vector.shape_cast %102 : vector<1x8x128xf32> to vector<8x128xf32>
    %104 = vector.shape_cast %101 : vector<8x128xf32> to vector<1x8x128xf32>
    tpu.vector_store %arg15[%c0_64, %c0_65, %c0_66], %104 {strides = array<i32>} : memref<1x8x128xf32, #tpu.memory_space<vmem>>, vector<1x8x128xf32>,
    return
  }
  func.func @transform_0(%arg0: i32, %arg1: memref<2xi32, #tpu.memory_space<smem>>) -> (i32, i32, i32) {
    %c0_i32 = arith.constant 0 : i32
    %c0_i32_0 = arith.constant 0 : i32
    %c0_i32_1 = arith.constant 0 : i32
    return %arg0, %c0_i32, %c0_i32_0 : i32, i32, i32
  }
  func.func @transform_1(%arg0: i32, %arg1: memref<2xi32, #tpu.memory_space<smem>>) -> (i32, i32) {
    %c0_i32 = arith.constant 0 : i32
    %c0_i32_0 = arith.constant 0 : i32
    %c0_i32_1 = arith.constant 0 : i32
    return %c0_i32, %c0_i32_0 : i32, i32
  }
  func.func @transform_2(%arg0: i32, %arg1: memref<2xi32, #tpu.memory_space<smem>>) -> (i32, i32) {
    %c0_i32 = arith.constant 0 : i32
    %c0_i32_0 = arith.constant 0 : i32
    %c0_i32_1 = arith.constant 0 : i32
    return %c0_i32, %c0_i32_0 : i32, i32
  }
  func.func @transform_3(%arg0: i32, %arg1: memref<2xi32, #tpu.memory_space<smem>>) -> (i32, i32) {
    %c0_i32 = arith.constant 0 : i32
    %c0_i32_0 = arith.constant 0 : i32
    %c0_i32_1 = arith.constant 0 : i32
    return %c0_i32, %c0_i32_0 : i32, i32
  }
  func.func @transform_4(%arg0: i32, %arg1: memref<2xi32, #tpu.memory_space<smem>>) -> (i32, i32) {
    %c0_i32 = arith.constant 0 : i32
    %c0_i32_0 = arith.constant 0 : i32
    %c0_i32_1 = arith.constant 0 : i32
    return %c0_i32, %c0_i32_0 : i32, i32
  }
  func.func @transform_5(%arg0: i32, %arg1: memref<2xi32, #tpu.memory_space<smem>>) -> (i32, i32) {
    %c0_i32 = arith.constant 0 : i32
    %c0_i32_0 = arith.constant 0 : i32
    %c0_i32_1 = arith.constant 0 : i32
    return %c0_i32, %c0_i32_0 : i32, i32
  }
  func.func @transform_6(%arg0: i32, %arg1: memref<2xi32, #tpu.memory_space<smem>>) -> (i32, i32) {
    %c0_i32 = arith.constant 0 : i32
    %c0_i32_0 = arith.constant 0 : i32
    %c0_i32_1 = arith.constant 0 : i32
    return %c0_i32, %c0_i32_0 : i32, i32
  }
  func.func @transform_7(%arg0: i32, %arg1: memref<2xi32, #tpu.memory_space<smem>>) -> (i32, i32) {
    %c0_i32 = arith.constant 0 : i32
    %c0_i32_0 = arith.constant 0 : i32
    %c0_i32_1 = arith.constant 0 : i32
    return %c0_i32, %c0_i32_0 : i32, i32
  }
  func.func @transform_8(%arg0: i32, %arg1: memref<2xi32, #tpu.memory_space<smem>>) -> (i32, i32) {
    %c0_i32 = arith.constant 0 : i32
    %c0_i32_0 = arith.constant 0 : i32
    %c0_i32_1 = arith.constant 0 : i32
    return %c0_i32, %c0_i32_0 : i32, i32
  }
  func.func @transform_9(%arg0: i32, %arg1: memref<2xi32, #tpu.memory_space<smem>>) -> (i32, i32) {
    %c0_i32 = arith.constant 0 : i32
    %c0_i32_0 = arith.constant 0 : i32
    %c0_i32_1 = arith.constant 0 : i32
    return %c0_i32, %c0_i32_0 : i32, i32
  }
  func.func @transform_10(%arg0: i32, %arg1: memref<2xi32, #tpu.memory_space<smem>>) -> (i32, i32) {
    %c0_i32 = arith.constant 0 : i32
    %c0_i32_0 = arith.constant 0 : i32
    %c0_i32_1 = arith.constant 0 : i32
    return %c0_i32, %c0_i32_0 : i32, i32
  }
  func.func @transform_11(%arg0: i32, %arg1: memref<2xi32, #tpu.memory_space<smem>>) -> (i32, i32) {
    %c0_i32 = arith.constant 0 : i32
    %c0_i32_0 = arith.constant 0 : i32
    %c0_i32_1 = arith.constant 0 : i32
    return %c0_i32, %c0_i32_0 : i32, i32
  }
  func.func @transform_12(%arg0: i32, %arg1: memref<2xi32, #tpu.memory_space<smem>>) -> (i32, i32) {
    %c0_i32 = arith.constant 0 : i32
    %c0_i32_0 = arith.constant 0 : i32
    %c0_i32_1 = arith.constant 0 : i32
    return %c0_i32, %c0_i32_0 : i32, i32
  }
  func.func @transform_13(%arg0: i32, %arg1: memref<2xi32, #tpu.memory_space<smem>>) -> (i32, i32, i32) {
    %c0_i32 = arith.constant 0 : i32
    %c0_i32_0 = arith.constant 0 : i32
    %c0_i32_1 = arith.constant 0 : i32
    return %arg0, %c0_i32, %c0_i32_0 : i32, i32, i32
  }
}

</mosaic_0001>

<llo_original>
// kernel: tpu_custom_call.1
$region0: #{tpu_custom_call.1}
  #allocation0 [shape = 'u32[]', space=smem, size = 0x4, offset = 0x4, fixed_abs, tag = 'smem constant byte address 0x4 - core index']
  #allocation1 [shape = 'u32[144,128]{1,0:T(1,128)}', space=vmem, size = 0x12000, scoped, tag = 'internal scratch']
  #allocation2 [shape = 'f32[128,32]{1,0:T(8,128)}', space=vmem, size = 0x10000, scoped, tag = 'scratch operand']
  #allocation3 [shape = 'f32[128,32]{1,0:T(8,128)}', space=vmem, size = 0x10000, scoped, tag = 'scratch operand']
  #allocation4 [shape = 'f32[128,8]{1,0:T(8,128)}', space=vmem, size = 0x10000, scoped, tag = 'scratch operand']
  #allocation5 [shape = 'f32[128,8]{1,0:T(8,128)}', space=vmem, size = 0x10000, scoped, tag = 'scratch operand']
  #allocation6 [shape = 's32[1]{0}', space=sflag, size = 0x4, scoped, tag = 'scoped memory for tpu_custom_call.1']
  #allocation7 [shape = 'u8[512]{0}', space=smem, size = 0x200, scoped, tag = 'prefetched SMEM operand 0']
  %s0 = inlined_call_operand.hbm [shape: s32[2], index: 0, kind: input, shape index: {}]
  %s1 = inlined_call_operand.vmem [shape: f32[2,16,128], index: 1, kind: input, shape index: {}]
  %s2 = inlined_call_operand.vmem [shape: f32[16,48], index: 2, kind: input, shape index: {}]
  %s3 = inlined_call_operand.vmem [shape: f32[16,1], index: 3, kind: input, shape index: {}]
  %s4 = inlined_call_operand.vmem [shape: f32[16,48], index: 4, kind: input, shape index: {}]
  %s5 = inlined_call_operand.vmem [shape: f32[16,1], index: 5, kind: input, shape index: {}]
  %s6 = inlined_call_operand.hbm [shape: f32[16,32], index: 6, kind: input, shape index: {}]
  %s7 = inlined_call_operand.hbm [shape: f32[8,32], index: 7, kind: input, shape index: {}]
  %s8 = inlined_call_operand.hbm [shape: f32[1,32], index: 8, kind: input, shape index: {}]
  %s9 = inlined_call_operand.hbm [shape: f32[16,32], index: 9, kind: input, shape index: {}]
  %s10 = inlined_call_operand.hbm [shape: f32[8,32], index: 10, kind: input, shape index: {}]
  %s11 = inlined_call_operand.vmem [shape: f32[1,32], index: 11, kind: input, shape index: {}]
  %s12 = inlined_call_operand.vmem [shape: f32[16,8], index: 12, kind: input, shape index: {}]
  %s13 = inlined_call_operand.vmem [shape: f32[1,8], index: 13, kind: input, shape index: {}]
  %s14 = inlined_call_operand.hbm [shape: f32[2,8,128], index: 14, kind: output, shape index: {}]
  %s15 = sld [smem:[#allocation0]]
  $region119: #{tpu_custom_call.1} parent=0
    _
  %s17 = ssub.s32 1, %s15
  %s18 = scalar_select 0, %s17, %s15
  %20 = dma.hbm_to_smem %s0, 16, [#allocation7], [#allocation6]
  %21 = dma.done [#allocation6], 16
  %22 = sfence
  $region1: #{tpu_custom_call.1} parent=0
    #allocation8 [shape = 'u8[8192]{0}', space=vmem, size = 0x2000, scoped, tag = 'input window, operand 6, single buffered']
    #allocation9 [shape = 's32[2]{0}', space=sflag, size = 0x8, scoped, tag = 'scoped memory for tpu_custom_call.1']
    #allocation10 [shape = 's32[2]{0}', space=sflag, size = 0x8, scoped, tag = 'scoped memory for tpu_custom_call.1']
    #allocation11 [shape = 'u8[4096]{0}', space=vmem, size = 0x1000, scoped, tag = 'input window, operand 7, single buffered']
    #allocation12 [shape = 's32[1]{0}', space=sflag, size = 0x4, scoped, tag = 'scoped memory for tpu_custom_call.1']
    #allocation13 [shape = 'u8[512]{0}', space=vmem, size = 0x400, scoped, tag = 'input window, operand 8, single buffered']
    #allocation14 [shape = 'u8[8192]{0}', space=vmem, size = 0x2000, scoped, tag = 'input window, operand 9, single buffered']
    #allocation15 [shape = 's32[1]{0}', space=sflag, size = 0x4, scoped, tag = 'scoped memory for tpu_custom_call.1']
    #allocation16 [shape = 'u8[4096]{0}', space=vmem, size = 0x1000, scoped, tag = 'input window, operand 10, single buffered']
    #allocation17 [shape = 'u8[8192]{0}', space=vmem, size = 0x2000, scoped, tag = 'output window, operand 0']
    %23 = vsyncpa [#allocation9], 0
    %24 = vsyncpa [#allocation12], 0
    %25 = vsyncpa [#allocation15], 0
    %26 = vsyncpa [#allocation10], 0
    %s27 = scalar_lea.sflag [#allocation10], 1
    %28 = vsyncpa %s27, 0
    loop: start=0, step=1, limit=4
    $region2: #{tpu_custom_call.1} parent=1 // loop_pre_header
      _
    $region3: #{tpu_custom_call.1} parent=1 // loop_header
      %s30 = sphi 0, %s34
      %p31 = scmp.ge.s32.totalorder %s30, 4
      %s40 = sphi 0, %s42
      %s43 = sphi 0, %s40
      %s44 = sphi 0, %s43
      %s60 = sphi 0, %s44
      %s64 = sphi 0, %s64
      %s66 = sphi 0, %s64
      %s67 = sphi 0, %s66
      %s81 = sphi 0, %s67
      %s85 = sphi 0, %s85
      %s87 = sphi 0, %s85
      %s88 = sphi 0, %s87
      %s102 = sphi 0, %s88
      %s106 = sphi 0, %s106
      %s108 = sphi 0, %s106
      %s109 = sphi 0, %s108
      %s123 = sphi 0, %s109
      %s127 = sphi 0, %s127
      %s129 = sphi 0, %s127
      %s130 = sphi 0, %s129
      %s144 = sphi 0, %s130
      %s148 = sphi 0, %s148
      %s150 = sphi 0, %s148
      %s151 = sphi 0, %s150
      %s165 = sphi 0, %s151
      %s169 = sphi 0, %s169
      %s171 = sphi 0, %s169
      %s172 = sphi 0, %s171
      %s186 = sphi 0, %s172
      %s190 = sphi 0, %s190
      %s192 = sphi 0, %s190
      %s193 = sphi 0, %s192
      %s207 = sphi 0, %s193
      %s211 = sphi 0, %s211
      %s213 = sphi 0, %s211
      %s214 = sphi 0, %s213
      %s228 = sphi 0, %s214
      %s232 = sphi 0, %s232
      %s234 = sphi 0, %s232
      %s235 = sphi 0, %s234
      %s249 = sphi 0, %s235
      %s253 = sphi 0, %s253
      %s255 = sphi 0, %s253
      %s256 = sphi 0, %s255
      %s270 = sphi 0, %s256
      %s274 = sphi 0, %s274
      %s276 = sphi 0, %s274
      %s277 = sphi 0, %s276
      %s291 = sphi 0, %s277
      %s295 = sphi 0, %s295
      %s297 = sphi 0, %s295
      %s298 = sphi 0, %s297
      %s312 = sphi 0, %s298
      %s318 = sphi 0, %s320
      %s321 = sphi 0, %s318
      %s322 = sphi 0, %s321
      %s338 = sphi 0, %s322
    $region4: #{tpu_custom_call.1} parent=1 // loop_header_branch
      %33 = sbr.rel (%p31) target = $region8
    $region5: #{tpu_custom_call.1} parent=1 // loop_body
      %s35 = ssub.s32 %s30, 1
      %s36 = ssub.s32 %s30, 2
      %s37 = sadd.s32 %s30, 1
      %s38 = ssub.s32 %s30, %s37
      %p39 = scmp.eq.s32.totalorder %s38, 0
      %s41 = sadd.s32 %s40, 1
      %s42 = scalar_select %p39, %s40, %s41
      %p45 = pneg %p39
      %p46 = scmp.eq.s32.totalorder %s30, 1
      %p47 = por %p45, %p46
      %p48 = scmp.ne.s32.totalorder %s40, %s43
      %p49 = scmp.eq.s32.totalorder %s30, 0
      %p50 = por %p48, %p49
      %p51 = scmp.ne.s32.totalorder %s40, %s43
      %p52 = scmp.eq.s32.totalorder %s35, 1
      %p53 = por %p51, %p52
      %p54 = scmp.ne.s32.totalorder %s43, %s44
      %p55 = scmp.eq.s32.totalorder %s35, 0
      %p56 = por %p54, %p55
      %p57 = scmp.ne.s32.totalorder %s43, %s44
      %p58 = scmp.eq.s32.totalorder %s36, 1
      %p59 = por %p57, %p58
      %p61 = scmp.ne.s32.totalorder %s44, %s60
      %p62 = scmp.eq.s32.totalorder %s36, 0
      %p63 = por %p61, %p62
      %s65 = sadd.s32 %s64, 1
      %p68 = scmp.eq.s32.totalorder %s30, 1
      %p69 = scmp.ne.s32.totalorder %s64, %s66
      %p70 = scmp.eq.s32.totalorder %s30, 0
      %p71 = por %p69, %p70
      %p72 = scmp.ne.s32.totalorder %s64, %s66
      %p73 = scmp.eq.s32.totalorder %s35, 1
      %p74 = por %p72, %p73
      %p75 = scmp.ne.s32.totalorder %s66, %s67
      %p76 = scmp.eq.s32.totalorder %s35, 0
      %p77 = por %p75, %p76
      %p78 = scmp.ne.s32.totalorder %s66, %s67
      %p79 = scmp.eq.s32.totalorder %s36, 1
      %p80 = por %p78, %p79
      %p82 = scmp.ne.s32.totalorder %s67, %s81
      %p83 = scmp.eq.s32.totalorder %s36, 0
      %p84 = por %p82, %p83
      %s86 = sadd.s32 %s85, 1
      %p89 = scmp.eq.s32.totalorder %s30, 1
      %p90 = scmp.ne.s32.totalorder %s85, %s87
      %p91 = scmp.eq.s32.totalorder %s30, 0
      %p92 = por %p90, %p91
      %p93 = scmp.ne.s32.totalorder %s85, %s87
      %p94 = scmp.eq.s32.totalorder %s35, 1
      %p95 = por %p93, %p94
      %p96 = scmp.ne.s32.totalorder %s87, %s88
      %p97 = scmp.eq.s32.totalorder %s35, 0
      %p98 = por %p96, %p97
      %p99 = scmp.ne.s32.totalorder %s87, %s88
      %p100 = scmp.eq.s32.totalorder %s36, 1
      %p101 = por %p99, %p100
      %p103 = scmp.ne.s32.totalorder %s88, %s102
      %p104 = scmp.eq.s32.totalorder %s36, 0
      %p105 = por %p103, %p104
      %s107 = sadd.s32 %s106, 1
      %p110 = scmp.eq.s32.totalorder %s30, 1
      %p111 = scmp.ne.s32.totalorder %s106, %s108
      %p112 = scmp.eq.s32.totalorder %s30, 0
      %p113 = por %p111, %p112
      %p114 = scmp.ne.s32.totalorder %s106, %s108
      %p115 = scmp.eq.s32.totalorder %s35, 1
      %p116 = por %p114, %p115
      %p117 = scmp.ne.s32.totalorder %s108, %s109
      %p118 = scmp.eq.s32.totalorder %s35, 0
      %p119 = por %p117, %p118
      %p120 = scmp.ne.s32.totalorder %s108, %s109
      %p121 = scmp.eq.s32.totalorder %s36, 1
      %p122 = por %p120, %p121
      %p124 = scmp.ne.s32.totalorder %s109, %s123
      %p125 = scmp.eq.s32.totalorder %s36, 0
      %p126 = por %p124, %p125
      %s128 = sadd.s32 %s127, 1
      %p131 = scmp.eq.s32.totalorder %s30, 1
      %p132 = scmp.ne.s32.totalorder %s127, %s129
      %p133 = scmp.eq.s32.totalorder %s30, 0
      %p134 = por %p132, %p133
      %p135 = scmp.ne.s32.totalorder %s127, %s129
      %p136 = scmp.eq.s32.totalorder %s35, 1
      %p137 = por %p135, %p136
      %p138 = scmp.ne.s32.totalorder %s129, %s130
      %p139 = scmp.eq.s32.totalorder %s35, 0
      %p140 = por %p138, %p139
      %p141 = scmp.ne.s32.totalorder %s129, %s130
      %p142 = scmp.eq.s32.totalorder %s36, 1
      %p143 = por %p141, %p142
      %p145 = scmp.ne.s32.totalorder %s130, %s144
      %p146 = scmp.eq.s32.totalorder %s36, 0
      %p147 = por %p145, %p146
      %s149 = sadd.s32 %s148, 1
      %p152 = scmp.eq.s32.totalorder %s30, 1
      %p153 = scmp.ne.s32.totalorder %s148, %s150
      %p154 = scmp.eq.s32.totalorder %s30, 0
      %p155 = por %p153, %p154
      %p156 = scmp.ne.s32.totalorder %s148, %s150
      %p157 = scmp.eq.s32.totalorder %s35, 1
      %p158 = por %p156, %p157
      %p159 = scmp.ne.s32.totalorder %s150, %s151
      %p160 = scmp.eq.s32.totalorder %s35, 0
      %p161 = por %p159, %p160
      %p162 = scmp.ne.s32.totalorder %s150, %s151
      %p163 = scmp.eq.s32.totalorder %s36, 1
      %p164 = por %p162, %p163
      %p166 = scmp.ne.s32.totalorder %s151, %s165
      %p167 = scmp.eq.s32.totalorder %s36, 0
      %p168 = por %p166, %p167
      %s170 = sadd.s32 %s169, 1
      %p173 = scmp.eq.s32.totalorder %s30, 1
      %p174 = scmp.ne.s32.totalorder %s169, %s171
      %p175 = scmp.eq.s32.totalorder %s30, 0
      %p176 = por %p174, %p175
      %p177 = scmp.ne.s32.totalorder %s169, %s171
      %p178 = scmp.eq.s32.totalorder %s35, 1
      %p179 = por %p177, %p178
      %p180 = scmp.ne.s32.totalorder %s171, %s172
      %p181 = scmp.eq.s32.totalorder %s35, 0
      %p182 = por %p180, %p181
      %p183 = scmp.ne.s32.totalorder %s171, %s172
      %p184 = scmp.eq.s32.totalorder %s36, 1
      %p185 = por %p183, %p184
      %p187 = scmp.ne.s32.totalorder %s172, %s186
      %p188 = scmp.eq.s32.totalorder %s36, 0
      %p189 = por %p187, %p188
      %s191 = sadd.s32 %s190, 1
      %p194 = scmp.eq.s32.totalorder %s30, 1
      %p195 = scmp.ne.s32.totalorder %s190, %s192
      %p196 = scmp.eq.s32.totalorder %s30, 0
      %p197 = por %p195, %p196
      %p198 = scmp.ne.s32.totalorder %s190, %s192
      %p199 = scmp.eq.s32.totalorder %s35, 1
      %p200 = por %p198, %p199
      %p201 = scmp.ne.s32.totalorder %s192, %s193
      %p202 = scmp.eq.s32.totalorder %s35, 0
      %p203 = por %p201, %p202
      %p204 = scmp.ne.s32.totalorder %s192, %s193
      %p205 = scmp.eq.s32.totalorder %s36, 1
      %p206 = por %p204, %p205
      %p208 = scmp.ne.s32.totalorder %s193, %s207
      %p209 = scmp.eq.s32.totalorder %s36, 0
      %p210 = por %p208, %p209
      %s212 = sadd.s32 %s211, 1
      %p215 = scmp.eq.s32.totalorder %s30, 1
      %p216 = scmp.ne.s32.totalorder %s211, %s213
      %p217 = scmp.eq.s32.totalorder %s30, 0
      %p218 = por %p216, %p217
      %p219 = scmp.ne.s32.totalorder %s211, %s213
      %p220 = scmp.eq.s32.totalorder %s35, 1
      %p221 = por %p219, %p220
      %p222 = scmp.ne.s32.totalorder %s213, %s214
      %p223 = scmp.eq.s32.totalorder %s35, 0
      %p224 = por %p222, %p223
      %p225 = scmp.ne.s32.totalorder %s213, %s214
      %p226 = scmp.eq.s32.totalorder %s36, 1
      %p227 = por %p225, %p226
      %p229 = scmp.ne.s32.totalorder %s214, %s228
      %p230 = scmp.eq.s32.totalorder %s36, 0
      %p231 = por %p229, %p230
      %s233 = sadd.s32 %s232, 1
      %p236 = scmp.eq.s32.totalorder %s30, 1
      %p237 = scmp.ne.s32.totalorder %s232, %s234
      %p238 = scmp.eq.s32.totalorder %s30, 0
      %p239 = por %p237, %p238
      %p240 = scmp.ne.s32.totalorder %s232, %s234
      %p241 = scmp.eq.s32.totalorder %s35, 1
      %p242 = por %p240, %p241
      %p243 = scmp.ne.s32.totalorder %s234, %s235
      %p244 = scmp.eq.s32.totalorder %s35, 0
      %p245 = por %p243, %p244
      %p246 = scmp.ne.s32.totalorder %s234, %s235
      %p247 = scmp.eq.s32.totalorder %s36, 1
      %p248 = por %p246, %p247
      %p250 = scmp.ne.s32.totalorder %s235, %s249
      %p251 = scmp.eq.s32.totalorder %s36, 0
      %p252 = por %p250, %p251
      %s254 = sadd.s32 %s253, 1
      %p257 = scmp.eq.s32.totalorder %s30, 1
      %p258 = scmp.ne.s32.totalorder %s253, %s255
      %p259 = scmp.eq.s32.totalorder %s30, 0
      %p260 = por %p258, %p259
      %p261 = scmp.ne.s32.totalorder %s253, %s255
      %p262 = scmp.eq.s32.totalorder %s35, 1
      %p263 = por %p261, %p262
      %p264 = scmp.ne.s32.totalorder %s255, %s256
      %p265 = scmp.eq.s32.totalorder %s35, 0
      %p266 = por %p264, %p265
      %p267 = scmp.ne.s32.totalorder %s255, %s256
      %p268 = scmp.eq.s32.totalorder %s36, 1
      %p269 = por %p267, %p268
      %p271 = scmp.ne.s32.totalorder %s256, %s270
      %p272 = scmp.eq.s32.totalorder %s36, 0
      %p273 = por %p271, %p272
      %s275 = sadd.s32 %s274, 1
      %p278 = scmp.eq.s32.totalorder %s30, 1
      %p279 = scmp.ne.s32.totalorder %s274, %s276
      %p280 = scmp.eq.s32.totalorder %s30, 0
      %p281 = por %p279, %p280
      %p282 = scmp.ne.s32.totalorder %s274, %s276
      %p283 = scmp.eq.s32.totalorder %s35, 1
      %p284 = por %p282, %p283
      %p285 = scmp.ne.s32.totalorder %s276, %s277
      %p286 = scmp.eq.s32.totalorder %s35, 0
      %p287 = por %p285, %p286
      %p288 = scmp.ne.s32.totalorder %s276, %s277
      %p289 = scmp.eq.s32.totalorder %s36, 1
      %p290 = por %p288, %p289
      %p292 = scmp.ne.s32.totalorder %s277, %s291
      %p293 = scmp.eq.s32.totalorder %s36, 0
      %p294 = por %p292, %p293
      %s296 = sadd.s32 %s295, 1
      %p299 = scmp.eq.s32.totalorder %s30, 1
      %p300 = scmp.ne.s32.totalorder %s295, %s297
      %p301 = scmp.eq.s32.totalorder %s30, 0
      %p302 = por %p300, %p301
      %p303 = scmp.ne.s32.totalorder %s295, %s297
      %p304 = scmp.eq.s32.totalorder %s35, 1
      %p305 = por %p303, %p304
      %p306 = scmp.ne.s32.totalorder %s297, %s298
      %p307 = scmp.eq.s32.totalorder %s35, 0
      %p308 = por %p306, %p307
      %p309 = scmp.ne.s32.totalorder %s297, %s298
      %p310 = scmp.eq.s32.totalorder %s36, 1
      %p311 = por %p309, %p310
      %p313 = scmp.ne.s32.totalorder %s298, %s312
      %p314 = scmp.eq.s32.totalorder %s36, 0
      %p315 = por %p313, %p314
      %s316 = ssub.s32 %s30, %s37
      %p317 = scmp.eq.s32.totalorder %s316, 0
      %s319 = sadd.s32 %s318, 1
      %s320 = scalar_select %p317, %s318, %s319
      %p323 = pneg %p317
      %p324 = scmp.eq.s32.totalorder %s30, 1
      %p325 = por %p323, %p324
      %p326 = scmp.ne.s32.totalorder %s318, %s321
      %p327 = scmp.eq.s32.totalorder %s30, 0
      %p328 = por %p326, %p327
      %p329 = scmp.ne.s32.totalorder %s318, %s321
      %p330 = scmp.eq.s32.totalorder %s35, 1
      %p331 = por %p329, %p330
      %p332 = scmp.ne.s32.totalorder %s321, %s322
      %p333 = scmp.eq.s32.totalorder %s35, 0
      %p334 = por %p332, %p333
      %p335 = scmp.ne.s32.totalorder %s321, %s322
      %p336 = scmp.eq.s32.totalorder %s36, 1
      %p337 = por %p335, %p336
      %p339 = scmp.ne.s32.totalorder %s322, %s338
      %p340 = scmp.eq.s32.totalorder %s36, 0
      %p341 = por %p339, %p340
      %p342 = scmp.le.s32.totalorder 1, %s30
      %p343 = scmp.lt.s32.totalorder %s30, 3
      %p344 = pnand %p342, %p343
      %p345 = pneg %p344
      // Predicated region
      $region9: #{tpu_custom_call.1} parent=5 // pred_check
        _
      $region10: #{tpu_custom_call.1} parent=5 // pred_check_branch
        %347 = sbr.rel (%p344) target = $region12
      $region11: #{tpu_custom_call.1} parent=5 // pred_region
        %s348 = ssub.s32 %s30, 1
        // Predicated region
        $region13: #{tpu_custom_call.1} parent=11 // pred_check
          %p349 = pneg %p77
        $region14: #{tpu_custom_call.1} parent=11 // pred_check_branch
          %351 = sbr.rel (%p349) target = $region16
        $region15: #{tpu_custom_call.1} parent=11 // pred_region
          _
        $region16: #{tpu_custom_call.1} parent=11 // pred_fallthru
          _
        // Predicated region
        $region17: #{tpu_custom_call.1} parent=11 // pred_check
          %p352 = pneg %p98
        $region18: #{tpu_custom_call.1} parent=11 // pred_check_branch
          %354 = sbr.rel (%p352) target = $region20
        $region19: #{tpu_custom_call.1} parent=11 // pred_region
          _
        $region20: #{tpu_custom_call.1} parent=11 // pred_fallthru
          _
        // Predicated region
        $region21: #{tpu_custom_call.1} parent=11 // pred_check
          %p355 = pneg %p119
        $region22: #{tpu_custom_call.1} parent=11 // pred_check_branch
          %357 = sbr.rel (%p355) target = $region24
        $region23: #{tpu_custom_call.1} parent=11 // pred_region
          _
        $region24: #{tpu_custom_call.1} parent=11 // pred_fallthru
          _
        // Predicated region
        $region25: #{tpu_custom_call.1} parent=11 // pred_check
          %p358 = pneg %p140
        $region26: #{tpu_custom_call.1} parent=11 // pred_check_branch
          %360 = sbr.rel (%p358) target = $region28
        $region27: #{tpu_custom_call.1} parent=11 // pred_region
          _
        $region28: #{tpu_custom_call.1} parent=11 // pred_fallthru
          _
        // Predicated region
        $region29: #{tpu_custom_call.1} parent=11 // pred_check
          %p361 = pneg %p161
        $region30: #{tpu_custom_call.1} parent=11 // pred_check_branch
          %363 = sbr.rel (%p361) target = $region32
        $region31: #{tpu_custom_call.1} parent=11 // pred_region
          %s365 = ssub.s32 256, 256
          %366 = vsyncadd [#allocation9], %s365
          %s367 = sshll.u32 [#allocation8], 4
          %s368 = int_to_ptr.vmem [resolvable:$true] %s367
          %373 = dma.hbm_to_vmem [thread:$0]  %s6, 256, %s368, [#allocation9], 128, 128, 8
        $region32: #{tpu_custom_call.1} parent=11 // pred_fallthru
          _
        // Predicated region
        $region33: #{tpu_custom_call.1} parent=11 // pred_check
          %p374 = pneg %p182
        $region34: #{tpu_custom_call.1} parent=11 // pred_check_branch
          %376 = sbr.rel (%p374) target = $region36
        $region35: #{tpu_custom_call.1} parent=11 // pred_region
          %s378 = ssub.s32 128, 128
          %379 = vsyncadd [#allocation12], %s378
          %s381 = sshll.u32 [#allocation11], 4
          %s382 = int_to_ptr.vmem [resolvable:$true] %s381
          %384 = dma.hbm_to_vmem [thread:$0]  %s7, 128, %s382, [#allocation12]
        $region36: #{tpu_custom_call.1} parent=11 // pred_fallthru
          _
        // Predicated region
        $region37: #{tpu_custom_call.1} parent=11 // pred_check
          %p385 = pneg %p203
        $region38: #{tpu_custom_call.1} parent=11 // pred_check_branch
          %387 = sbr.rel (%p385) target = $region40
        $region39: #{tpu_custom_call.1} parent=11 // pred_region
          %s389 = ssub.s32 16, 16
          %390 = vsyncadd [#allocation12], %s389
          %s392 = sshll.u32 [#allocation13], 4
          %s393 = int_to_ptr.vmem [resolvable:$true] %s392
          %395 = dma.hbm_to_vmem [thread:$0]  %s8, 16, %s393, [#allocation12]
        $region40: #{tpu_custom_call.1} parent=11 // pred_fallthru
          _
        // Predicated region
        $region41: #{tpu_custom_call.1} parent=11 // pred_check
          %p396 = pneg %p224
        $region42: #{tpu_custom_call.1} parent=11 // pred_check_branch
          %398 = sbr.rel (%p396) target = $region44
        $region43: #{tpu_custom_call.1} parent=11 // pred_region
          %s400 = ssub.s32 256, 256
          %401 = vsyncadd [#allocation15], %s400
          %s402 = sshll.u32 [#allocation14], 4
          %s403 = int_to_ptr.vmem [resolvable:$true] %s402
          %408 = dma.hbm_to_vmem [thread:$0]  %s9, 256, %s403, [#allocation15], 128, 128, 8
        $region44: #{tpu_custom_call.1} parent=11 // pred_fallthru
          _
        // Predicated region
        $region45: #{tpu_custom_call.1} parent=11 // pred_check
          %p409 = pneg %p245
        $region46: #{tpu_custom_call.1} parent=11 // pred_check_branch
          %411 = sbr.rel (%p409) target = $region48
        $region47: #{tpu_custom_call.1} parent=11 // pred_region
          %s413 = ssub.s32 128, 128
          %414 = vsyncadd [#allocation15], %s413
          %s416 = sshll.u32 [#allocation16], 4
          %s417 = int_to_ptr.vmem [resolvable:$true] %s416
          %419 = dma.hbm_to_vmem [thread:$0]  %s10, 128, %s417, [#allocation15]
        $region48: #{tpu_custom_call.1} parent=11 // pred_fallthru
          _
        // Predicated region
        $region49: #{tpu_custom_call.1} parent=11 // pred_check
          %p420 = pneg %p266
        $region50: #{tpu_custom_call.1} parent=11 // pred_check_branch
          %422 = sbr.rel (%p420) target = $region52
        $region51: #{tpu_custom_call.1} parent=11 // pred_region
          _
        $region52: #{tpu_custom_call.1} parent=11 // pred_fallthru
          _
        // Predicated region
        $region53: #{tpu_custom_call.1} parent=11 // pred_check
          %p423 = pneg %p287
        $region54: #{tpu_custom_call.1} parent=11 // pred_check_branch
          %425 = sbr.rel (%p423) target = $region56
        $region55: #{tpu_custom_call.1} parent=11 // pred_region
          _
        $region56: #{tpu_custom_call.1} parent=11 // pred_fallthru
          _
        // Predicated region
        $region57: #{tpu_custom_call.1} parent=11 // pred_check
          %p426 = pneg %p308
        $region58: #{tpu_custom_call.1} parent=11 // pred_check_branch
          %428 = sbr.rel (%p426) target = $region60
        $region59: #{tpu_custom_call.1} parent=11 // pred_region
          _
        $region60: #{tpu_custom_call.1} parent=11 // pred_fallthru
          _
      $region12: #{tpu_custom_call.1} parent=5 // pred_fallthru
        _
      %p429 = scmp.lt.s32.totalorder %s30, 2
      // Predicated region
      $region61: #{tpu_custom_call.1} parent=5 // pred_check
        %p430 = pneg %p429
      $region62: #{tpu_custom_call.1} parent=5 // pred_check_branch
        %432 = sbr.rel (%p430) target = $region64
      $region63: #{tpu_custom_call.1} parent=5 // pred_region
        // Predicated region
        $region65: #{tpu_custom_call.1} parent=63 // pred_check
          %p433 = pneg %p50
        $region66: #{tpu_custom_call.1} parent=63 // pred_check_branch
          %435 = sbr.rel (%p433) target = $region68
        $region67: #{tpu_custom_call.1} parent=63 // pred_region
          %p436 = scmp.lt.s32.totalorder %s30, 1
          %s437 = scalar_select %p436, %s30, 1
          %s438 = smul.addr %s437, 2
          %s439 = smul.addr %s438, 8
          %s440 = scalar_lea.vmem %s1, %s439
        $region68: #{tpu_custom_call.1} parent=63 // pred_fallthru
          _
      $region64: #{tpu_custom_call.1} parent=5 // pred_fallthru
        _
      %p441 = scmp.le.s32.totalorder 1, %s30
      %p442 = scmp.lt.s32.totalorder %s30, 3
      %p443 = pnand %p441, %p442
      %p444 = pneg %p443
      // Predicated region
      $region69: #{tpu_custom_call.1} parent=5 // pred_check
        _
      $region70: #{tpu_custom_call.1} parent=5 // pred_check_branch
        %446 = sbr.rel (%p443) target = $region72
      $region71: #{tpu_custom_call.1} parent=5 // pred_region
        %s447 = ssub.s32 %s30, 1
        // Predicated region
        $region73: #{tpu_custom_call.1} parent=71 // pred_check
          %p448 = pneg %p161
        $region74: #{tpu_custom_call.1} parent=71 // pred_check_branch
          %450 = sbr.rel (%p448) target = $region76
        $region75: #{tpu_custom_call.1} parent=71 // pred_region
          %451 = dma.done [#allocation9], 256
        $region76: #{tpu_custom_call.1} parent=71 // pred_fallthru
          _
        // Predicated region
        $region77: #{tpu_custom_call.1} parent=71 // pred_check
          %p452 = pneg %p182
        $region78: #{tpu_custom_call.1} parent=71 // pred_check_branch
          %454 = sbr.rel (%p452) target = $region80
        $region79: #{tpu_custom_call.1} parent=71 // pred_region
          %455 = dma.done [#allocation12], 128
        $region80: #{tpu_custom_call.1} parent=71 // pred_fallthru
          _
        // Predicated region
        $region81: #{tpu_custom_call.1} parent=71 // pred_check
          %p456 = pneg %p203
        $region82: #{tpu_custom_call.1} parent=71 // pred_check_branch
          %458 = sbr.rel (%p456) target = $region84
        $region83: #{tpu_custom_call.1} parent=71 // pred_region
          %459 = dma.done [#allocation12], 16
        $region84: #{tpu_custom_call.1} parent=71 // pred_fallthru
          _
        // Predicated region
        $region85: #{tpu_custom_call.1} parent=71 // pred_check
          %p460 = pneg %p224
        $region86: #{tpu_custom_call.1} parent=71 // pred_check_branch
          %462 = sbr.rel (%p460) target = $region88
        $region87: #{tpu_custom_call.1} parent=71 // pred_region
          %463 = dma.done [#allocation15], 256
        $region88: #{tpu_custom_call.1} parent=71 // pred_fallthru
          _
        // Predicated region
        $region89: #{tpu_custom_call.1} parent=71 // pred_check
          %p464 = pneg %p245
        $region90: #{tpu_custom_call.1} parent=71 // pred_check_branch
          %466 = sbr.rel (%p464) target = $region92
        $region91: #{tpu_custom_call.1} parent=71 // pred_region
          %467 = dma.done [#allocation15], 128
        $region92: #{tpu_custom_call.1} parent=71 // pred_fallthru
          _
        %p468 = scmp.lt.s32.totalorder %s35, 1
        %s469 = scalar_select %p468, %s35, 1
        %s470 = smul.addr %s469, 2
        %s471 = smul.addr %s470, 8
        %s472 = scalar_lea.vmem %s1, %s471
        %p473 = pneg %p56
        %p474 = pneg %p53
        %p475 = pneg %p77
        %p476 = pneg %p74
        %p477 = pneg %p98
        %p478 = pneg %p95
        %p479 = pneg %p119
        %p480 = pneg %p116
        %p481 = pneg %p140
        %p482 = pneg %p137
        %p483 = pneg %p161
        %p484 = pneg %p158
        %p485 = pneg %p182
        %p486 = pneg %p179
        %p487 = pneg %p203
        %p488 = pneg %p200
        %p489 = pneg %p224
        %p490 = pneg %p221
        %p491 = pneg %p245
        %p492 = pneg %p242
        %p493 = pneg %p266
        %p494 = pneg %p263
        %p495 = pneg %p287
        %p496 = pneg %p284
        %p497 = pneg %p308
        %p498 = pneg %p305
        %p499 = pneg %p334
        %p500 = pneg %p331
        %s501 = sand.u32 %s321, 1
        %s502 = scalar_lea.sflag [#allocation10], %s501
        %s503 = sand.u32 %s321, 1
        %s504 = smul.addr %s503, 8
        %s505 = scalar_lea.vmem [#allocation17], %s504
        %p506 = scmp.lt.s32.totalorder %s35, 1
        %s507 = scalar_select %p506, %s35, 1
        %s508 = smul.addr %s507, 2
        %s509 = smul.addr %s508, 8
        %s510 = scalar_lea.vmem %s1, %s509
        %s511 = sld [smem:[#allocation7 + %s35]]
        %v512 = vlaneseq
        %v513 = vand.u32 %v512, 127
        %vm514 = vcmp.ge.s32.totalorder %v513, 1
        %vm515 = vcmp.lt.s32.totalorder %v513, 127
        %v516 = vstv %s511
        %vm517 = vcmp.lt.s32.totalorder %v513, %v516
        %v518 = vld [vmem:[%s510] sm:$0xff]
        %v519 = vld [vmem:[%s510 + $0x8] sm:$0xff]
        %v520 = vsel %vm517, 1, 0
        %vm521 = vcmp.eq.s32.totalorder %v520, 1
        %v522 = vsel %vm521, %v518, 0.0
        %v523 = vsel %vm521, %v519, 0.0
        %v524 = vld [vmem:[%s2] sm:$0xff]
        %v525 = vld [vmem:[%s2 + $0x8] sm:$0xff]
        %526 = vrot.lane.b32.xlu0 %v522, 1
        %v527 = vpop.permute.xlu0 %526
        %528 = vrot.lane.b32.xlu0 %v523, 1
        %v529 = vpop.permute.xlu0 %528
        %v530 = vsel %vm514, 1, 0
        %vm531 = vcmp.eq.s32.totalorder %v530, 1
        %v532 = vsel %vm531, %v527, 0.0
        %v533 = vsel %vm531, %v529, 0.0
        %534 = vrot.lane.b32.xlu0 %v522, 127
        %v535 = vpop.permute.xlu0 %534
        %536 = vrot.lane.b32.xlu0 %v523, 127
        %v537 = vpop.permute.xlu0 %536
        %v538 = vsel %vm515, 1, 0
        %vm539 = vcmp.eq.s32.totalorder %v538, 1
        %v540 = vsel %vm539, %v535, 0.0
        %v541 = vsel %vm539, %v537, 0.0
        %v542 = vld [vmem:[%s3] sm:$0xff]
        %v543 = vld [vmem:[%s3 + $0x8] sm:$0xff]
        %545 = vset.pattern.permute.xlu0 0
        %546 = vperm.xlu0 %545, %v542
        %v547 = vpop.permute.xlu0 %546
        %550 = vset.pattern.permute.xlu0 0
        %551 = vperm.xlu0 %550, %v543
        %v552 = vpop.permute.xlu0 %551
        %vm554 = vcmask 392192
        %v556 = vsel %vm554, %v524, 0
        %v559 = vsel %vm554, %v525, 0
        %561 = vmatprep.subr.mxu0 0.0
        %562 = vmatpush1.msra.mxu0 0.0
        %563 = vmatprep.subr.mxu0 0.0
        %564 = vmatpush1.msra.mxu0 0.0
        %565 = vmatprep.subr.mxu0 0.0
        %566 = vmatpush1.msra.mxu0 0.0
        %567 = vmatprep.subr.mxu0 0.0
        %568 = vmatpush1.msra.mxu0 0.0
        %569 = vmatprep.subr.mxu0 0.0
        %570 = vmatpush1.msra.mxu0 0.0
        %571 = vmatprep.subr.mxu0 0.0
        %572 = vmatpush1.msra.mxu0 0.0
        %573 = vmatprep.subr.mxu0 0.0
        %574 = vmatpush1.msra.mxu0 0.0
        %575 = vmatprep.subr.mxu0 0.0
        %576 = vmatpush1.msra.mxu0 0.0
        %577 = vmatprep.subr.mxu0 0.0
        %578 = vmatpush1.msra.mxu0 0.0
        %579 = vmatprep.subr.mxu0 0.0
        %580 = vmatpush1.msra.mxu0 0.0
        %581 = vmatprep.subr.mxu0 0.0
        %582 = vmatpush1.msra.mxu0 %v541
        %583 = vmatprep.subr.mxu0 0.0
        %584 = vmatpush1.msra.mxu0 %v540
        %585 = vmatprep.subr.mxu0 0.0
        %586 = vmatpush1.msra.mxu0 %v523
        %587 = vmatprep.subr.mxu0 0.0
        %588 = vmatpush1.msra.mxu0 %v522
        %589 = vmatprep.subr.mxu0 0.0
        %590 = vmatpush1.msra.mxu0 %v533
        %591 = vmatprep.subr.mxu0 0.0
        %592 = vmatpush1.msra.mxu0 %v532
        %593 = vmatprep.subr.mxu0 0.0
        %594 = vmatpush2.msra.mxu0 0.0
        %595 = vmatprep.subr.mxu0 0.0
        %596 = vmatpush2.msra.mxu0 0.0
        %597 = vmatprep.subr.mxu0 0.0
        %598 = vmatpush2.msra.mxu0 0.0
        %599 = vmatprep.subr.mxu0 0.0
        %600 = vmatpush2.msra.mxu0 0.0
        %601 = vmatprep.subr.mxu0 0.0
        %602 = vmatpush2.msra.mxu0 0.0
        %603 = vmatprep.subr.mxu0 0.0
        %604 = vmatpush2.msra.mxu0 0.0
        %605 = vmatprep.subr.mxu0 0.0
        %606 = vmatpush2.msra.mxu0 0.0
        %607 = vmatprep.subr.mxu0 0.0
        %608 = vmatpush2.msra.mxu0 0.0
        %609 = vmatprep.subr.mxu0 0.0
        %610 = vmatpush2.msra.mxu0 0.0
        %611 = vmatprep.subr.mxu0 0.0
        %612 = vmatpush2.msra.mxu0 0.0
        %613 = vmatprep.subr.mxu0 0.0
        %614 = vmatpush2.msra.mxu0 0.0
        %615 = vmatprep.subr.mxu0 0.0
        %616 = vmatpush2.msra.mxu0 0.0
        %617 = vmatprep.subr.mxu0 0.0
        %618 = vmatpush2.msra.mxu0 0.0
        %619 = vmatprep.subr.mxu0 0.0
        %620 = vmatpush2.msra.mxu0 0.0
        %621 = vmatprep.subr.mxu0 0.0
        %622 = vmatpush2.msra.mxu0 0.0
        %623 = vmatprep.subr.mxu0 0.0
        %624 = vmatpush2.msra.mxu0 0.0
        %625 = vmatprep.mubr.f32.mxu0 0.0
        %626 = vmatmul.mubr.f32.gmra.mxu0 %v556
        %v627 = vpop.f32.mrf.mxu0
        %v628 = vadd.f32 %v547, %v627
        %v629 = vpop.f32.mrf.mxu0
        %630 = vmatprep.mubr.f32.mxu0 0.0
        %631 = vmatmul.mubr.f32.gmra.mxu0 %v559
        %v632 = vpop.f32.mrf.mxu0
        %v633 = vadd.f32 %v552, %v632
        %v634 = vpop.f32.mrf.mxu0
        %635 = vdwg.mxu0
        %v636 = vsub.f32 0.0, %v628
        %v637 = vsub.f32 0.0, %v633
        %v638 = vmul.f32 %v636, 1.442695
        %v639 = vpow.pop %v638
        %v640 = vmul.f32 %v637, 1.442695
        %v641 = vpow.pop %v640
        %v642 = vadd.f32 %v639, 1.0
        %v643 = vadd.f32 %v641, 1.0
        %v644 = vrcp.pop %v642
        %v645 = vmul.f32 1.0, %v644
        %v646 = vrcp.pop %v643
        %v647 = vmul.f32 1.0, %v646
        %v648 = vmul.f32 %v628, %v645
        %v649 = vmul.f32 %v633, %v647
        %v650 = vsel %vm521, %v648, 0.0
        %v651 = vsel %vm521, %v649, 0.0
        %v652 = vld [vmem:[%s4] sm:$0xff]
        %v653 = vld [vmem:[%s4 + $0x8] sm:$0xff]
        %654 = vrot.lane.b32.xlu0 %v650, 1
        %v655 = vpop.permute.xlu0 %654
        %656 = vrot.lane.b32.xlu0 %v651, 1
        %v657 = vpop.permute.xlu0 %656
        %v658 = vsel %vm531, %v655, 0.0
        %v659 = vsel %vm531, %v657, 0.0
        %660 = vrot.lane.b32.xlu0 %v650, 127
        %v661 = vpop.permute.xlu0 %660
        %662 = vrot.lane.b32.xlu0 %v651, 127
        %v663 = vpop.permute.xlu0 %662
        %v664 = vsel %vm539, %v661, 0.0
        %v665 = vsel %vm539, %v663, 0.0
        %v666 = vld [vmem:[%s5] sm:$0xff]
        %v667 = vld [vmem:[%s5 + $0x8] sm:$0xff]
        %669 = vset.pattern.permute.xlu0 0
        %670 = vperm.xlu0 %669, %v666
        %v671 = vpop.permute.xlu0 %670
        %674 = vset.pattern.permute.xlu0 0
        %675 = vperm.xlu0 %674, %v667
        %v676 = vpop.permute.xlu0 %675
        %v679 = vsel %vm554, %v652, 0
        %v682 = vsel %vm554, %v653, 0
        %684 = vmatprep.subr.mxu0 0.0
        %685 = vmatpush1.msra.mxu0 0.0
        %686 = vmatprep.subr.mxu0 0.0
        %687 = vmatpush1.msra.mxu0 0.0
        %688 = vmatprep.subr.mxu0 0.0
        %689 = vmatpush1.msra.mxu0 0.0
        %690 = vmatprep.subr.mxu0 0.0
        %691 = vmatpush1.msra.mxu0 0.0
        %692 = vmatprep.subr.mxu0 0.0
        %693 = vmatpush1.msra.mxu0 0.0
        %694 = vmatprep.subr.mxu0 0.0
        %695 = vmatpush1.msra.mxu0 0.0
        %696 = vmatprep.subr.mxu0 0.0
        %697 = vmatpush1.msra.mxu0 0.0
        %698 = vmatprep.subr.mxu0 0.0
        %699 = vmatpush1.msra.mxu0 0.0
        %700 = vmatprep.subr.mxu0 0.0
        %701 = vmatpush1.msra.mxu0 0.0
        %702 = vmatprep.subr.mxu0 0.0
        %703 = vmatpush1.msra.mxu0 0.0
        %704 = vmatprep.subr.mxu0 0.0
        %705 = vmatpush1.msra.mxu0 %v665
        %706 = vmatprep.subr.mxu0 0.0
        %707 = vmatpush1.msra.mxu0 %v664
        %708 = vmatprep.subr.mxu0 0.0
        %709 = vmatpush1.msra.mxu0 %v651
        %710 = vmatprep.subr.mxu0 0.0
        %711 = vmatpush1.msra.mxu0 %v650
        %712 = vmatprep.subr.mxu0 0.0
        %713 = vmatpush1.msra.mxu0 %v659
        %714 = vmatprep.subr.mxu0 0.0
        %715 = vmatpush1.msra.mxu0 %v658
        %716 = vmatprep.subr.mxu0 0.0
        %717 = vmatpush2.msra.mxu0 0.0
        %718 = vmatprep.subr.mxu0 0.0
        %719 = vmatpush2.msra.mxu0 0.0
        %720 = vmatprep.subr.mxu0 0.0
        %721 = vmatpush2.msra.mxu0 0.0
        %722 = vmatprep.subr.mxu0 0.0
        %723 = vmatpush2.msra.mxu0 0.0
        %724 = vmatprep.subr.mxu0 0.0
        %725 = vmatpush2.msra.mxu0 0.0
        %726 = vmatprep.subr.mxu0 0.0
        %727 = vmatpush2.msra.mxu0 0.0
        %728 = vmatprep.subr.mxu0 0.0
        %729 = vmatpush2.msra.mxu0 0.0
        %730 = vmatprep.subr.mxu0 0.0
        %731 = vmatpush2.msra.mxu0 0.0
        %732 = vmatprep.subr.mxu0 0.0
        %733 = vmatpush2.msra.mxu0 0.0
        %734 = vmatprep.subr.mxu0 0.0
        %735 = vmatpush2.msra.mxu0 0.0
        %736 = vmatprep.subr.mxu0 0.0
        %737 = vmatpush2.msra.mxu0 0.0
        %738 = vmatprep.subr.mxu0 0.0
        %739 = vmatpush2.msra.mxu0 0.0
        %740 = vmatprep.subr.mxu0 0.0
        %741 = vmatpush2.msra.mxu0 0.0
        %742 = vmatprep.subr.mxu0 0.0
        %743 = vmatpush2.msra.mxu0 0.0
        %744 = vmatprep.subr.mxu0 0.0
        %745 = vmatpush2.msra.mxu0 0.0
        %746 = vmatprep.subr.mxu0 0.0
        %747 = vmatpush2.msra.mxu0 0.0
        %748 = vmatprep.mubr.f32.mxu0 0.0
        %749 = vmatmul.mubr.f32.gmra.mxu0 %v679
        %v750 = vpop.f32.mrf.mxu0
        %v751 = vadd.f32 %v671, %v750
        %v752 = vpop.f32.mrf.mxu0
        %753 = vmatprep.mubr.f32.mxu0 0.0
        %754 = vmatmul.mubr.f32.gmra.mxu0 %v682
        %v755 = vpop.f32.mrf.mxu0
        %v756 = vadd.f32 %v676, %v755
        %v757 = vpop.f32.mrf.mxu0
        %758 = vdwg.mxu0
        %v759 = vsub.f32 0.0, %v751
        %v760 = vsub.f32 0.0, %v756
        %v761 = vmul.f32 %v759, 1.442695
        %v762 = vpow.pop %v761
        %v763 = vmul.f32 %v760, 1.442695
        %v764 = vpow.pop %v763
        %v765 = vadd.f32 %v762, 1.0
        %v766 = vadd.f32 %v764, 1.0
        %v767 = vrcp.pop %v765
        %v768 = vmul.f32 1.0, %v767
        %v769 = vrcp.pop %v766
        %v770 = vmul.f32 1.0, %v769
        %v771 = vmul.f32 %v751, %v768
        %v772 = vmul.f32 %v756, %v770
        %v773 = vsel %vm521, %v771, 0.0
        %v774 = vsel %vm521, %v772, 0.0
        %775 = vxpose.xlu0.b32.start [1/16] %v773, 128
        %776 = vxpose.xlu0.b32.cont [2/16] %v774, 128
        %777 = vxpose.xlu0.b32.cont [3/16] 0.0, 128
        %778 = vxpose.xlu0.b32.cont [4/16] 0.0, 128
        %779 = vxpose.xlu0.b32.cont [5/16] 0.0, 128
        %780 = vxpose.xlu0.b32.cont [6/16] 0.0, 128
        %781 = vxpose.xlu0.b32.cont [7/16] 0.0, 128
        %782 = vxpose.xlu0.b32.cont [8/16] 0.0, 128
        %783 = vxpose.xlu0.b32.cont [9/16] 0.0, 128
        %784 = vxpose.xlu0.b32.cont [10/16] 0.0, 128
        %785 = vxpose.xlu0.b32.cont [11/16] 0.0, 128
        %786 = vxpose.xlu0.b32.cont [12/16] 0.0, 128
        %787 = vxpose.xlu0.b32.cont [13/16] 0.0, 128
        %788 = vxpose.xlu0.b32.cont [14/16] 0.0, 128
        %789 = vxpose.xlu0.b32.cont [15/16] 0.0, 128
        %790 = vxpose.xlu0.b32.end [16/16] 0.0, 128
        %v791 = vpop.trf.xlu0
        %v792 = vpop.trf.xlu0
        %v793 = vpop.trf.xlu0
        %v794 = vpop.trf.xlu0
        %v795 = vpop.trf.xlu0
        %v796 = vpop.trf.xlu0
        %v797 = vpop.trf.xlu0
        %v798 = vpop.trf.xlu0
        %v799 = vpop.trf.xlu0
        %v800 = vpop.trf.xlu0
        %v801 = vpop.trf.xlu0
        %v802 = vpop.trf.xlu0
        %v803 = vpop.trf.xlu0
        %v804 = vpop.trf.xlu0
        %v805 = vpop.trf.xlu0
        %v806 = vpop.trf.xlu0
        %v807 = vld [vmem:[#allocation8] sm:$0xff]
        %v808 = vld [vmem:[#allocation8 + $0x8] sm:$0xff]
        %v809 = vld [vmem:[#allocation13] sm:$0x1]
        %v811 = vlaneseq
        %v812 = vshrl.u32 %v811, 7
        %v813 = vsub.s32 0, %v812
        %v814 = vrot.slane %v809, %v813
        %vm816 = vcmask 130048
        %v818 = vsel %vm816, %v791, 0
        %v821 = vsel %vm816, %v792, 0
        %v824 = vsel %vm816, %v793, 0
        %v827 = vsel %vm816, %v794, 0
        %v830 = vsel %vm816, %v795, 0
        %v833 = vsel %vm816, %v796, 0
        %v836 = vsel %vm816, %v797, 0
        %v839 = vsel %vm816, %v798, 0
        %v842 = vsel %vm816, %v799, 0
        %v845 = vsel %vm816, %v800, 0
        %v848 = vsel %vm816, %v801, 0
        %v851 = vsel %vm816, %v802, 0
        %v854 = vsel %vm816, %v803, 0
        %v857 = vsel %vm816, %v804, 0
        %v860 = vsel %vm816, %v805, 0
        %v863 = vsel %vm816, %v806, 0
        %865 = vmatprep.subr.mxu0 0.0
        %866 = vmatpush1.msra.mxu0 0.0
        %867 = vmatprep.subr.mxu0 0.0
        %868 = vmatpush1.msra.mxu0 0.0
        %869 = vmatprep.subr.mxu0 0.0
        %870 = vmatpush1.msra.mxu0 0.0
        %871 = vmatprep.subr.mxu0 0.0
        %872 = vmatpush1.msra.mxu0 0.0
        %873 = vmatprep.subr.mxu0 0.0
        %874 = vmatpush1.msra.mxu0 0.0
        %875 = vmatprep.subr.mxu0 0.0
        %876 = vmatpush1.msra.mxu0 0.0
        %877 = vmatprep.subr.mxu0 0.0
        %878 = vmatpush1.msra.mxu0 0.0
        %879 = vmatprep.subr.mxu0 0.0
        %880 = vmatpush1.msra.mxu0 0.0
        %881 = vmatprep.subr.mxu0 0.0
        %882 = vmatpush1.msra.mxu0 0.0
        %883 = vmatprep.subr.mxu0 0.0
        %884 = vmatpush1.msra.mxu0 0.0
        %885 = vmatprep.subr.mxu0 0.0
        %886 = vmatpush1.msra.mxu0 0.0
        %887 = vmatprep.subr.mxu0 0.0
        %888 = vmatpush1.msra.mxu0 0.0
        %889 = vmatprep.subr.mxu0 0.0
        %890 = vmatpush1.msra.mxu0 0.0
        %891 = vmatprep.subr.mxu0 0.0
        %892 = vmatpush1.msra.mxu0 0.0
        %893 = vmatprep.subr.mxu0 0.0
        %894 = vmatpush1.msra.mxu0 %v808
        %895 = vmatprep.subr.mxu0 0.0
        %896 = vmatpush1.msra.mxu0 %v807
        %897 = vmatprep.subr.mxu0 0.0
        %898 = vmatpush2.msra.mxu0 0.0
        %899 = vmatprep.subr.mxu0 0.0
        %900 = vmatpush2.msra.mxu0 0.0
        %901 = vmatprep.subr.mxu0 0.0
        %902 = vmatpush2.msra.mxu0 0.0
        %903 = vmatprep.subr.mxu0 0.0
        %904 = vmatpush2.msra.mxu0 0.0
        %905 = vmatprep.subr.mxu0 0.0
        %906 = vmatpush2.msra.mxu0 0.0
        %907 = vmatprep.subr.mxu0 0.0
        %908 = vmatpush2.msra.mxu0 0.0
        %909 = vmatprep.subr.mxu0 0.0
        %910 = vmatpush2.msra.mxu0 0.0
        %911 = vmatprep.subr.mxu0 0.0
        %912 = vmatpush2.msra.mxu0 0.0
        %913 = vmatprep.subr.mxu0 0.0
        %914 = vmatpush2.msra.mxu0 0.0
        %915 = vmatprep.subr.mxu0 0.0
        %916 = vmatpush2.msra.mxu0 0.0
        %917 = vmatprep.subr.mxu0 0.0
        %918 = vmatpush2.msra.mxu0 0.0
        %919 = vmatprep.subr.mxu0 0.0
        %920 = vmatpush2.msra.mxu0 0.0
        %921 = vmatprep.subr.mxu0 0.0
        %922 = vmatpush2.msra.mxu0 0.0
        %923 = vmatprep.subr.mxu0 0.0
        %924 = vmatpush2.msra.mxu0 0.0
        %925 = vmatprep.subr.mxu0 0.0
        %926 = vmatpush2.msra.mxu0 0.0
        %927 = vmatprep.subr.mxu0 0.0
        %928 = vmatpush2.msra.mxu0 0.0
        %929 = vmatprep.mubr.f32.mxu0 0.0
        %930 = vmatmul.mubr.f32.gmra.mxu0 %v818
        %v931 = vpop.f32.mrf.mxu0
        %v932 = vadd.f32 %v814, %v931
        %v933 = vpop.f32.mrf.mxu0
        %934 = vmatprep.mubr.f32.mxu0 0.0
        %935 = vmatmul.mubr.f32.gmra.mxu0 %v821
        %v936 = vpop.f32.mrf.mxu0
        %v937 = vadd.f32 %v814, %v936
        %v938 = vpop.f32.mrf.mxu0
        %939 = vmatprep.mubr.f32.mxu0 0.0
        %940 = vmatmul.mubr.f32.gmra.mxu0 %v824
        %v941 = vpop.f32.mrf.mxu0
        %v942 = vadd.f32 %v814, %v941
        %v943 = vpop.f32.mrf.mxu0
        %944 = vmatprep.mubr.f32.mxu0 0.0
        %945 = vmatmul.mubr.f32.gmra.mxu0 %v827
        %v946 = vpop.f32.mrf.mxu0
        %v947 = vadd.f32 %v814, %v946
        %v948 = vpop.f32.mrf.mxu0
        %949 = vmatprep.mubr.f32.mxu0 0.0
        %950 = vmatmul.mubr.f32.gmra.mxu0 %v830
        %v951 = vpop.f32.mrf.mxu0
        %v952 = vadd.f32 %v814, %v951
        %v953 = vpop.f32.mrf.mxu0
        %954 = vmatprep.mubr.f32.mxu0 0.0
        %955 = vmatmul.mubr.f32.gmra.mxu0 %v833
        %v956 = vpop.f32.mrf.mxu0
        %v957 = vadd.f32 %v814, %v956
        %v958 = vpop.f32.mrf.mxu0
        %959 = vmatprep.mubr.f32.mxu0 0.0
        %960 = vmatmul.mubr.f32.gmra.mxu0 %v836
        %v961 = vpop.f32.mrf.mxu0
        %v962 = vadd.f32 %v814, %v961
        %v963 = vpop.f32.mrf.mxu0
        %964 = vmatprep.mubr.f32.mxu0 0.0
        %965 = vmatmul.mubr.f32.gmra.mxu0 %v839
        %v966 = vpop.f32.mrf.mxu0
        %v967 = vadd.f32 %v814, %v966
        %v968 = vpop.f32.mrf.mxu0
        %969 = vmatprep.mubr.f32.mxu0 0.0
        %970 = vmatmul.mubr.f32.gmra.mxu0 %v842
        %v971 = vpop.f32.mrf.mxu0
        %v972 = vadd.f32 %v814, %v971
        %v973 = vpop.f32.mrf.mxu0
        %974 = vmatprep.mubr.f32.mxu0 0.0
        %975 = vmatmul.mubr.f32.gmra.mxu0 %v845
        %v976 = vpop.f32.mrf.mxu0
        %v977 = vadd.f32 %v814, %v976
        %v978 = vpop.f32.mrf.mxu0
        %979 = vmatprep.mubr.f32.mxu0 0.0
        %980 = vmatmul.mubr.f32.gmra.mxu0 %v848
        %v981 = vpop.f32.mrf.mxu0
        %v982 = vadd.f32 %v814, %v981
        %v983 = vpop.f32.mrf.mxu0
        %984 = vmatprep.mubr.f32.mxu0 0.0
        %985 = vmatmul.mubr.f32.gmra.mxu0 %v851
        %v986 = vpop.f32.mrf.mxu0
        %v987 = vadd.f32 %v814, %v986
        %v988 = vpop.f32.mrf.mxu0
        %989 = vmatprep.mubr.f32.mxu0 0.0
        %990 = vmatmul.mubr.f32.gmra.mxu0 %v854
        %v991 = vpop.f32.mrf.mxu0
        %v992 = vadd.f32 %v814, %v991
        %v993 = vpop.f32.mrf.mxu0
        %994 = vmatprep.mubr.f32.mxu0 0.0
        %995 = vmatmul.mubr.f32.gmra.mxu0 %v857
        %v996 = vpop.f32.mrf.mxu0
        %v997 = vadd.f32 %v814, %v996
        %v998 = vpop.f32.mrf.mxu0
        %999 = vmatprep.mubr.f32.mxu0 0.0
        %1000 = vmatmul.mubr.f32.gmra.mxu0 %v860
        %v1001 = vpop.f32.mrf.mxu0
        %v1002 = vadd.f32 %v814, %v1001
        %v1003 = vpop.f32.mrf.mxu0
        %1004 = vmatprep.mubr.f32.mxu0 0.0
        %1005 = vmatmul.mubr.f32.gmra.mxu0 %v863
        %v1006 = vpop.f32.mrf.mxu0
        %v1007 = vadd.f32 %v814, %v1006
        %v1008 = vpop.f32.mrf.mxu0
        %1009 = vdwg.mxu0
        %vm1010 = vcmask 261120
        %1011 = vst.msk [vmem:[#allocation2] sm:$0xff] %vm1010, %v932
        %1012 = vst.msk [vmem:[#allocation2 + $0x8] sm:$0xff] %vm1010, %v937
        %1013 = vst.msk [vmem:[#allocation2 + $0x10] sm:$0xff] %vm1010, %v942
        %1014 = vst.msk [vmem:[#allocation2 + $0x18] sm:$0xff] %vm1010, %v947
        %1015 = vst.msk [vmem:[#allocation2 + $0x20] sm:$0xff] %vm1010, %v952
        %1016 = vst.msk [vmem:[#allocation2 + $0x28] sm:$0xff] %vm1010, %v957
        %1017 = vst.msk [vmem:[#allocation2 + $0x30] sm:$0xff] %vm1010, %v962
        %1018 = vst.msk [vmem:[#allocation2 + $0x38] sm:$0xff] %vm1010, %v967
        %1019 = vst.msk [vmem:[#allocation2 + $0x40] sm:$0xff] %vm1010, %v972
        %1020 = vst.msk [vmem:[#allocation2 + $0x48] sm:$0xff] %vm1010, %v977
        %1021 = vst.msk [vmem:[#allocation2 + $0x50] sm:$0xff] %vm1010, %v982
        %1022 = vst.msk [vmem:[#allocation2 + $0x58] sm:$0xff] %vm1010, %v987
        %1023 = vst.msk [vmem:[#allocation2 + $0x60] sm:$0xff] %vm1010, %v992
        %1024 = vst.msk [vmem:[#allocation2 + $0x68] sm:$0xff] %vm1010, %v997
        %1025 = vst.msk [vmem:[#allocation2 + $0x70] sm:$0xff] %vm1010, %v1002
        %1026 = vst.msk [vmem:[#allocation2 + $0x78] sm:$0xff] %vm1010, %v1007
        %v1027 = vld [vmem:[#allocation14] sm:$0xff]
        %v1028 = vld [vmem:[#allocation14 + $0x8] sm:$0xff]
        %v1029 = vld [vmem:[%s11] sm:$0x1]
        %v1031 = vlaneseq
        %v1032 = vshrl.u32 %v1031, 7
        %v1033 = vsub.s32 0, %v1032
        %v1034 = vrot.slane %v1029, %v1033
        %1036 = vmatprep.subr.mxu0 0.0
        %1037 = vmatpush1.msra.mxu0 0.0
        %1038 = vmatprep.subr.mxu0 0.0
        %1039 = vmatpush1.msra.mxu0 0.0
        %1040 = vmatprep.subr.mxu0 0.0
        %1041 = vmatpush1.msra.mxu0 0.0
        %1042 = vmatprep.subr.mxu0 0.0
        %1043 = vmatpush1.msra.mxu0 0.0
        %1044 = vmatprep.subr.mxu0 0.0
        %1045 = vmatpush1.msra.mxu0 0.0
        %1046 = vmatprep.subr.mxu0 0.0
        %1047 = vmatpush1.msra.mxu0 0.0
        %1048 = vmatprep.subr.mxu0 0.0
        %1049 = vmatpush1.msra.mxu0 0.0
        %1050 = vmatprep.subr.mxu0 0.0
        %1051 = vmatpush1.msra.mxu0 0.0
        %1052 = vmatprep.subr.mxu0 0.0
        %1053 = vmatpush1.msra.mxu0 0.0
        %1054 = vmatprep.subr.mxu0 0.0
        %1055 = vmatpush1.msra.mxu0 0.0
        %1056 = vmatprep.subr.mxu0 0.0
        %1057 = vmatpush1.msra.mxu0 0.0
        %1058 = vmatprep.subr.mxu0 0.0
        %1059 = vmatpush1.msra.mxu0 0.0
        %1060 = vmatprep.subr.mxu0 0.0
        %1061 = vmatpush1.msra.mxu0 0.0
        %1062 = vmatprep.subr.mxu0 0.0
        %1063 = vmatpush1.msra.mxu0 0.0
        %1064 = vmatprep.subr.mxu0 0.0
        %1065 = vmatpush1.msra.mxu0 %v1028
        %1066 = vmatprep.subr.mxu0 0.0
        %1067 = vmatpush1.msra.mxu0 %v1027
        %1068 = vmatprep.subr.mxu0 0.0
        %1069 = vmatpush2.msra.mxu0 0.0
        %1070 = vmatprep.subr.mxu0 0.0
        %1071 = vmatpush2.msra.mxu0 0.0
        %1072 = vmatprep.subr.mxu0 0.0
        %1073 = vmatpush2.msra.mxu0 0.0
        %1074 = vmatprep.subr.mxu0 0.0
        %1075 = vmatpush2.msra.mxu0 0.0
        %1076 = vmatprep.subr.mxu0 0.0
        %1077 = vmatpush2.msra.mxu0 0.0
        %1078 = vmatprep.subr.mxu0 0.0
        %1079 = vmatpush2.msra.mxu0 0.0
        %1080 = vmatprep.subr.mxu0 0.0
        %1081 = vmatpush2.msra.mxu0 0.0
        %1082 = vmatprep.subr.mxu0 0.0
        %1083 = vmatpush2.msra.mxu0 0.0
        %1084 = vmatprep.subr.mxu0 0.0
        %1085 = vmatpush2.msra.mxu0 0.0
        %1086 = vmatprep.subr.mxu0 0.0
        %1087 = vmatpush2.msra.mxu0 0.0
        %1088 = vmatprep.subr.mxu0 0.0
        %1089 = vmatpush2.msra.mxu0 0.0
        %1090 = vmatprep.subr.mxu0 0.0
        %1091 = vmatpush2.msra.mxu0 0.0
        %1092 = vmatprep.subr.mxu0 0.0
        %1093 = vmatpush2.msra.mxu0 0.0
        %1094 = vmatprep.subr.mxu0 0.0
        %1095 = vmatpush2.msra.mxu0 0.0
        %1096 = vmatprep.subr.mxu0 0.0
        %1097 = vmatpush2.msra.mxu0 0.0
        %1098 = vmatprep.subr.mxu0 0.0
        %1099 = vmatpush2.msra.mxu0 0.0
        %1100 = vmatprep.mubr.f32.mxu0 0.0
        %1101 = vmatmul.mubr.f32.gmra.mxu0 %v818
        %v1102 = vpop.f32.mrf.mxu0
        %v1103 = vadd.f32 %v1034, %v1102
        %v1104 = vpop.f32.mrf.mxu0
        %1105 = vmatprep.mubr.f32.mxu0 0.0
        %1106 = vmatmul.mubr.f32.gmra.mxu0 %v821
        %v1107 = vpop.f32.mrf.mxu0
        %v1108 = vadd.f32 %v1034, %v1107
        %v1109 = vpop.f32.mrf.mxu0
        %1110 = vmatprep.mubr.f32.mxu0 0.0
        %1111 = vmatmul.mubr.f32.gmra.mxu0 %v824
        %v1112 = vpop.f32.mrf.mxu0
        %v1113 = vadd.f32 %v1034, %v1112
        %v1114 = vpop.f32.mrf.mxu0
        %1115 = vmatprep.mubr.f32.mxu0 0.0
        %1116 = vmatmul.mubr.f32.gmra.mxu0 %v827
        %v1117 = vpop.f32.mrf.mxu0
        %v1118 = vadd.f32 %v1034, %v1117
        %v1119 = vpop.f32.mrf.mxu0
        %1120 = vmatprep.mubr.f32.mxu0 0.0
        %1121 = vmatmul.mubr.f32.gmra.mxu0 %v830
        %v1122 = vpop.f32.mrf.mxu0
        %v1123 = vadd.f32 %v1034, %v1122
        %v1124 = vpop.f32.mrf.mxu0
        %1125 = vmatprep.mubr.f32.mxu0 0.0
        %1126 = vmatmul.mubr.f32.gmra.mxu0 %v833
        %v1127 = vpop.f32.mrf.mxu0
        %v1128 = vadd.f32 %v1034, %v1127
        %v1129 = vpop.f32.mrf.mxu0
        %1130 = vmatprep.mubr.f32.mxu0 0.0
        %1131 = vmatmul.mubr.f32.gmra.mxu0 %v836
        %v1132 = vpop.f32.mrf.mxu0
        %v1133 = vadd.f32 %v1034, %v1132
        %v1134 = vpop.f32.mrf.mxu0
        %1135 = vmatprep.mubr.f32.mxu0 0.0
        %1136 = vmatmul.mubr.f32.gmra.mxu0 %v839
        %v1137 = vpop.f32.mrf.mxu0
        %v1138 = vadd.f32 %v1034, %v1137
        %v1139 = vpop.f32.mrf.mxu0
        %1140 = vmatprep.mubr.f32.mxu0 0.0
        %1141 = vmatmul.mubr.f32.gmra.mxu0 %v842
        %v1142 = vpop.f32.mrf.mxu0
        %v1143 = vadd.f32 %v1034, %v1142
        %v1144 = vpop.f32.mrf.mxu0
        %1145 = vmatprep.mubr.f32.mxu0 0.0
        %1146 = vmatmul.mubr.f32.gmra.mxu0 %v845
        %v1147 = vpop.f32.mrf.mxu0
        %v1148 = vadd.f32 %v1034, %v1147
        %v1149 = vpop.f32.mrf.mxu0
        %1150 = vmatprep.mubr.f32.mxu0 0.0
        %1151 = vmatmul.mubr.f32.gmra.mxu0 %v848
        %v1152 = vpop.f32.mrf.mxu0
        %v1153 = vadd.f32 %v1034, %v1152
        %v1154 = vpop.f32.mrf.mxu0
        %1155 = vmatprep.mubr.f32.mxu0 0.0
        %1156 = vmatmul.mubr.f32.gmra.mxu0 %v851
        %v1157 = vpop.f32.mrf.mxu0
        %v1158 = vadd.f32 %v1034, %v1157
        %v1159 = vpop.f32.mrf.mxu0
        %1160 = vmatprep.mubr.f32.mxu0 0.0
        %1161 = vmatmul.mubr.f32.gmra.mxu0 %v854
        %v1162 = vpop.f32.mrf.mxu0
        %v1163 = vadd.f32 %v1034, %v1162
        %v1164 = vpop.f32.mrf.mxu0
        %1165 = vmatprep.mubr.f32.mxu0 0.0
        %1166 = vmatmul.mubr.f32.gmra.mxu0 %v857
        %v1167 = vpop.f32.mrf.mxu0
        %v1168 = vadd.f32 %v1034, %v1167
        %v1169 = vpop.f32.mrf.mxu0
        %1170 = vmatprep.mubr.f32.mxu0 0.0
        %1171 = vmatmul.mubr.f32.gmra.mxu0 %v860
        %v1172 = vpop.f32.mrf.mxu0
        %v1173 = vadd.f32 %v1034, %v1172
        %v1174 = vpop.f32.mrf.mxu0
        %1175 = vmatprep.mubr.f32.mxu0 0.0
        %1176 = vmatmul.mubr.f32.gmra.mxu0 %v863
        %v1177 = vpop.f32.mrf.mxu0
        %v1178 = vadd.f32 %v1034, %v1177
        %v1179 = vpop.f32.mrf.mxu0
        %1180 = vdwg.mxu0
        %1181 = vst.msk [vmem:[#allocation3] sm:$0xff] %vm1010, %v1103
        %1182 = vst.msk [vmem:[#allocation3 + $0x8] sm:$0xff] %vm1010, %v1108
        %1183 = vst.msk [vmem:[#allocation3 + $0x10] sm:$0xff] %vm1010, %v1113
        %1184 = vst.msk [vmem:[#allocation3 + $0x18] sm:$0xff] %vm1010, %v1118
        %1185 = vst.msk [vmem:[#allocation3 + $0x20] sm:$0xff] %vm1010, %v1123
        %1186 = vst.msk [vmem:[#allocation3 + $0x28] sm:$0xff] %vm1010, %v1128
        %1187 = vst.msk [vmem:[#allocation3 + $0x30] sm:$0xff] %vm1010, %v1133
        %1188 = vst.msk [vmem:[#allocation3 + $0x38] sm:$0xff] %vm1010, %v1138
        %1189 = vst.msk [vmem:[#allocation3 + $0x40] sm:$0xff] %vm1010, %v1143
        %1190 = vst.msk [vmem:[#allocation3 + $0x48] sm:$0xff] %vm1010, %v1148
        %1191 = vst.msk [vmem:[#allocation3 + $0x50] sm:$0xff] %vm1010, %v1153
        %1192 = vst.msk [vmem:[#allocation3 + $0x58] sm:$0xff] %vm1010, %v1158
        %1193 = vst.msk [vmem:[#allocation3 + $0x60] sm:$0xff] %vm1010, %v1163
        %1194 = vst.msk [vmem:[#allocation3 + $0x68] sm:$0xff] %vm1010, %v1168
        %1195 = vst.msk [vmem:[#allocation3 + $0x70] sm:$0xff] %vm1010, %v1173
        %1196 = vst.msk [vmem:[#allocation3 + $0x78] sm:$0xff] %vm1010, %v1178
        %v1197 = vld [vmem:[#allocation11] sm:$0xff]
        %v1198 = vld [vmem:[#allocation16] sm:$0xff]
        loop: start=0, step=1, limit=128
        $region93: #{tpu_custom_call.1} parent=71 // loop_pre_header
          _
        $region94: #{tpu_custom_call.1} parent=71 // loop_header
          %s1200 = sphi 0, %s1204
          %p1201 = scmp.ge.s32.totalorder %s1200, 128
          %v1205 = vphi 0.0, %v1309
          %v1206 = vphi 0.0, %v1303
        $region95: #{tpu_custom_call.1} parent=71 // loop_header_branch
          %1203 = sbr.rel (%p1201) target = $region99
        $region96: #{tpu_custom_call.1} parent=71 // loop_body
          %s1207 = scalar_lea.vmem [#allocation2], %s1200
          %v1208 = vld [vmem:[%s1207] sm:$0x1]
          %1210 = vrot.lane.b32.xlu0 %v1205, 104
          %v1211 = vpop.permute.xlu0 %1210
          %vm1212 = vcmask 64512
          %v1213 = vsel %vm1212, %v1211, 0
          %1215 = vmatprep.subr.mxu0 0.0
          %1216 = vmatpush1.msra.mxu0 0.0
          %1217 = vmatprep.subr.mxu0 0.0
          %1218 = vmatpush1.msra.mxu0 0.0
          %1219 = vmatprep.subr.mxu0 0.0
          %1220 = vmatpush1.msra.mxu0 0.0
          %1221 = vmatprep.subr.mxu0 0.0
          %1222 = vmatpush1.msra.mxu0 0.0
          %1223 = vmatprep.subr.mxu0 0.0
          %1224 = vmatpush1.msra.mxu0 0.0
          %1225 = vmatprep.subr.mxu0 0.0
          %1226 = vmatpush1.msra.mxu0 0.0
          %1227 = vmatprep.subr.mxu0 0.0
          %1228 = vmatpush1.msra.mxu0 0.0
          %1229 = vmatprep.subr.mxu0 0.0
          %1230 = vmatpush1.msra.mxu0 0.0
          %1231 = vmatprep.subr.mxu0 0.0
          %1232 = vmatpush1.msra.mxu0 0.0
          %1233 = vmatprep.subr.mxu0 0.0
          %1234 = vmatpush1.msra.mxu0 0.0
          %1235 = vmatprep.subr.mxu0 0.0
          %1236 = vmatpush1.msra.mxu0 0.0
          %1237 = vmatprep.subr.mxu0 0.0
          %1238 = vmatpush1.msra.mxu0 0.0
          %1239 = vmatprep.subr.mxu0 0.0
          %1240 = vmatpush1.msra.mxu0 0.0
          %1241 = vmatprep.subr.mxu0 0.0
          %1242 = vmatpush1.msra.mxu0 0.0
          %1243 = vmatprep.subr.mxu0 0.0
          %1244 = vmatpush1.msra.mxu0 0.0
          %1245 = vmatprep.subr.mxu0 0.0
          %1246 = vmatpush1.msra.mxu0 %v1197
          %1247 = vmatprep.subr.mxu0 0.0
          %1248 = vmatpush2.msra.mxu0 0.0
          %1249 = vmatprep.subr.mxu0 0.0
          %1250 = vmatpush2.msra.mxu0 0.0
          %1251 = vmatprep.subr.mxu0 0.0
          %1252 = vmatpush2.msra.mxu0 0.0
          %1253 = vmatprep.subr.mxu0 0.0
          %1254 = vmatpush2.msra.mxu0 0.0
          %1255 = vmatprep.subr.mxu0 0.0
          %1256 = vmatpush2.msra.mxu0 0.0
          %1257 = vmatprep.subr.mxu0 0.0
          %1258 = vmatpush2.msra.mxu0 0.0
          %1259 = vmatprep.subr.mxu0 0.0
          %1260 = vmatpush2.msra.mxu0 0.0
          %1261 = vmatprep.subr.mxu0 0.0
          %1262 = vmatpush2.msra.mxu0 0.0
          %1263 = vmatprep.subr.mxu0 0.0
          %1264 = vmatpush2.msra.mxu0 0.0
          %1265 = vmatprep.subr.mxu0 0.0
          %1266 = vmatpush2.msra.mxu0 0.0
          %1267 = vmatprep.subr.mxu0 0.0
          %1268 = vmatpush2.msra.mxu0 0.0
          %1269 = vmatprep.subr.mxu0 0.0
          %1270 = vmatpush2.msra.mxu0 0.0
          %1271 = vmatprep.subr.mxu0 0.0
          %1272 = vmatpush2.msra.mxu0 0.0
          %1273 = vmatprep.subr.mxu0 0.0
          %1274 = vmatpush2.msra.mxu0 0.0
          %1275 = vmatprep.subr.mxu0 0.0
          %1276 = vmatpush2.msra.mxu0 0.0
          %1277 = vmatprep.subr.mxu0 0.0
          %1278 = vmatpush2.msra.mxu0 0.0
          %1279 = vmatprep.mubr.f32.mxu0 0.0
          %1280 = vmatmul.mubr.f32.gmra.mxu0 %v1213
          %v1281 = vpop.f32.mrf.mxu0
          %v1282 = vadd.f32 0.0, %v1281
          %v1283 = vpop.f32.mrf.mxu0
          %1284 = vdwg.mxu0
          %v1285 = vadd.f32 %v1208, %v1282
          %v1286 = vsub.f32 0.0, %v1285
          %v1287 = vmul.f32 %v1286, 1.442695
          %v1288 = vpow.pop %v1287
          %v1289 = vadd.f32 %v1288, 1.0
          %v1290 = vrcp.pop %v1289
          %v1291 = vmul.f32 1.0, %v1290
          %v1292 = vtanh.pop %v1285
          %v1293 = vmul.f32 %v1291, %v1206
          %1295 = vrot.lane.b32.xlu0 %v1292, 112
          %v1296 = vpop.permute.xlu0 %1295
          %v1298 = vmul.f32 %v1291, %v1296
          %1300 = vrot.lane.b32.xlu0 %v1298, 8
          %v1301 = vpop.permute.xlu0 %1300
          %v1303 = vadd.f32 %v1293, %v1301
          %v1304 = vtanh.pop %v1303
          %1306 = vrot.lane.b32.xlu0 %v1304, 16
          %v1307 = vpop.permute.xlu0 %1306
          %v1309 = vmul.f32 %v1291, %v1307
          %p1310 = scmp.lt.s32.totalorder %s1200, %s511
          %s1311 = scalar_select %p1310, 1, 0
          %v1312 = vstv %s1311
          %vm1313 = vcmp.eq.s32.totalorder %v1312, 1
          %v1314 = vsel %vm1313, %v1309, 0.0
          %1316 = vrot.lane.b32.xlu0 %v1314, 104
          %v1317 = vpop.permute.xlu0 %1316
          %s1319 = scalar_lea.vmem [#allocation4], %s1200
          %vm1320 = vcmask 57344
          %1321 = vst.msk [vmem:[%s1319] sm:$0x1] %vm1320, %v1317
        $region97: #{tpu_custom_call.1} parent=71 // loop_footer
          %s1204 = sadd.s32 1, %s1200
        $region98: #{tpu_custom_call.1} parent=71 // loop_footer_branch
          %1199 = sbr.rel target = $region94
        $region99: #{tpu_custom_call.1} parent=71 // loop_exit
          _
        loop: start=0, step=1, limit=128
        $region100: #{tpu_custom_call.1} parent=71 // loop_pre_header
          _
        $region101: #{tpu_custom_call.1} parent=71 // loop_header
          %s1323 = sphi 0, %s1327
          %p1324 = scmp.ge.s32.totalorder %s1323, 128
          %v1328 = vphi 0.0, %v1438
          %v1329 = vphi 0.0, %v1439
        $region102: #{tpu_custom_call.1} parent=71 // loop_header_branch
          %1326 = sbr.rel (%p1324) target = $region106
        $region103: #{tpu_custom_call.1} parent=71 // loop_body
          %s1330 = ssub.s32 127, %s1323
          %s1331 = scalar_lea.vmem [#allocation3], %s1330
          %v1332 = vld [vmem:[%s1331] sm:$0x1]
          %1334 = vrot.lane.b32.xlu0 %v1328, 104
          %v1335 = vpop.permute.xlu0 %1334
          %vm1336 = vcmask 64512
          %v1337 = vsel %vm1336, %v1335, 0
          %1339 = vmatprep.subr.mxu0 0.0
          %1340 = vmatpush1.msra.mxu0 0.0
          %1341 = vmatprep.subr.mxu0 0.0
          %1342 = vmatpush1.msra.mxu0 0.0
          %1343 = vmatprep.subr.mxu0 0.0
          %1344 = vmatpush1.msra.mxu0 0.0
          %1345 = vmatprep.subr.mxu0 0.0
          %1346 = vmatpush1.msra.mxu0 0.0
          %1347 = vmatprep.subr.mxu0 0.0
          %1348 = vmatpush1.msra.mxu0 0.0
          %1349 = vmatprep.subr.mxu0 0.0
          %1350 = vmatpush1.msra.mxu0 0.0
          %1351 = vmatprep.subr.mxu0 0.0
          %1352 = vmatpush1.msra.mxu0 0.0
          %1353 = vmatprep.subr.mxu0 0.0
          %1354 = vmatpush1.msra.mxu0 0.0
          %1355 = vmatprep.subr.mxu0 0.0
          %1356 = vmatpush1.msra.mxu0 0.0
          %1357 = vmatprep.subr.mxu0 0.0
          %1358 = vmatpush1.msra.mxu0 0.0
          %1359 = vmatprep.subr.mxu0 0.0
          %1360 = vmatpush1.msra.mxu0 0.0
          %1361 = vmatprep.subr.mxu0 0.0
          %1362 = vmatpush1.msra.mxu0 0.0
          %1363 = vmatprep.subr.mxu0 0.0
          %1364 = vmatpush1.msra.mxu0 0.0
          %1365 = vmatprep.subr.mxu0 0.0
          %1366 = vmatpush1.msra.mxu0 0.0
          %1367 = vmatprep.subr.mxu0 0.0
          %1368 = vmatpush1.msra.mxu0 0.0
          %1369 = vmatprep.subr.mxu0 0.0
          %1370 = vmatpush1.msra.mxu0 %v1198
          %1371 = vmatprep.subr.mxu0 0.0
          %1372 = vmatpush2.msra.mxu0 0.0
          %1373 = vmatprep.subr.mxu0 0.0
          %1374 = vmatpush2.msra.mxu0 0.0
          %1375 = vmatprep.subr.mxu0 0.0
          %1376 = vmatpush2.msra.mxu0 0.0
          %1377 = vmatprep.subr.mxu0 0.0
          %1378 = vmatpush2.msra.mxu0 0.0
          %1379 = vmatprep.subr.mxu0 0.0
          %1380 = vmatpush2.msra.mxu0 0.0
          %1381 = vmatprep.subr.mxu0 0.0
          %1382 = vmatpush2.msra.mxu0 0.0
          %1383 = vmatprep.subr.mxu0 0.0
          %1384 = vmatpush2.msra.mxu0 0.0
          %1385 = vmatprep.subr.mxu0 0.0
          %1386 = vmatpush2.msra.mxu0 0.0
          %1387 = vmatprep.subr.mxu0 0.0
          %1388 = vmatpush2.msra.mxu0 0.0
          %1389 = vmatprep.subr.mxu0 0.0
          %1390 = vmatpush2.msra.mxu0 0.0
          %1391 = vmatprep.subr.mxu0 0.0
          %1392 = vmatpush2.msra.mxu0 0.0
          %1393 = vmatprep.subr.mxu0 0.0
          %1394 = vmatpush2.msra.mxu0 0.0
          %1395 = vmatprep.subr.mxu0 0.0
          %1396 = vmatpush2.msra.mxu0 0.0
          %1397 = vmatprep.subr.mxu0 0.0
          %1398 = vmatpush2.msra.mxu0 0.0
          %1399 = vmatprep.subr.mxu0 0.0
          %1400 = vmatpush2.msra.mxu0 0.0
          %1401 = vmatprep.subr.mxu0 0.0
          %1402 = vmatpush2.msra.mxu0 0.0
          %1403 = vmatprep.mubr.f32.mxu0 0.0
          %1404 = vmatmul.mubr.f32.gmra.mxu0 %v1337
          %v1405 = vpop.f32.mrf.mxu0
          %v1406 = vadd.f32 0.0, %v1405
          %v1407 = vpop.f32.mrf.mxu0
          %1408 = vdwg.mxu0
          %v1409 = vadd.f32 %v1332, %v1406
          %v1410 = vsub.f32 0.0, %v1409
          %v1411 = vmul.f32 %v1410, 1.442695
          %v1412 = vpow.pop %v1411
          %v1413 = vadd.f32 %v1412, 1.0
          %v1414 = vrcp.pop %v1413
          %v1415 = vmul.f32 1.0, %v1414
          %v1416 = vtanh.pop %v1409
          %v1417 = vmul.f32 %v1415, %v1329
          %1419 = vrot.lane.b32.xlu0 %v1416, 112
          %v1420 = vpop.permute.xlu0 %1419
          %v1422 = vmul.f32 %v1415, %v1420
          %1424 = vrot.lane.b32.xlu0 %v1422, 8
          %v1425 = vpop.permute.xlu0 %1424
          %v1427 = vadd.f32 %v1417, %v1425
          %v1428 = vtanh.pop %v1427
          %1430 = vrot.lane.b32.xlu0 %v1428, 16
          %v1431 = vpop.permute.xlu0 %1430
          %v1433 = vmul.f32 %v1415, %v1431
          %p1434 = scmp.lt.s32.totalorder %s1330, %s511
          %s1435 = scalar_select %p1434, 1, 0
          %v1436 = vstv %s1435
          %vm1437 = vcmp.eq.s32.totalorder %v1436, 1
          %v1438 = vsel %vm1437, %v1433, 0.0
          %v1439 = vsel %vm1437, %v1427, 0.0
          %1441 = vrot.lane.b32.xlu0 %v1438, 104
          %v1442 = vpop.permute.xlu0 %1441
          %s1444 = scalar_lea.vmem [#allocation5], %s1330
          %vm1445 = vcmask 57344
          %1446 = vst.msk [vmem:[%s1444] sm:$0x1] %vm1445, %v1442
        $region104: #{tpu_custom_call.1} parent=71 // loop_footer
          %s1327 = sadd.s32 1, %s1323
        $region105: #{tpu_custom_call.1} parent=71 // loop_footer_branch
          %1322 = sbr.rel target = $region101
        $region106: #{tpu_custom_call.1} parent=71 // loop_exit
          _
        %v1447 = vld [vmem:[#allocation4] sm:$0xff]
        %v1448 = vld [vmem:[#allocation4 + $0x8] sm:$0xff]
        %v1449 = vld [vmem:[#allocation4 + $0x10] sm:$0xff]
        %v1450 = vld [vmem:[#allocation4 + $0x18] sm:$0xff]
        %v1451 = vld [vmem:[#allocation4 + $0x20] sm:$0xff]
        %v1452 = vld [vmem:[#allocation4 + $0x28] sm:$0xff]
        %v1453 = vld [vmem:[#allocation4 + $0x30] sm:$0xff]
        %v1454 = vld [vmem:[#allocation4 + $0x38] sm:$0xff]
        %v1455 = vld [vmem:[#allocation4 + $0x40] sm:$0xff]
        %v1456 = vld [vmem:[#allocation4 + $0x48] sm:$0xff]
        %v1457 = vld [vmem:[#allocation4 + $0x50] sm:$0xff]
        %v1458 = vld [vmem:[#allocation4 + $0x58] sm:$0xff]
        %v1459 = vld [vmem:[#allocation4 + $0x60] sm:$0xff]
        %v1460 = vld [vmem:[#allocation4 + $0x68] sm:$0xff]
        %v1461 = vld [vmem:[#allocation4 + $0x70] sm:$0xff]
        %v1462 = vld [vmem:[#allocation4 + $0x78] sm:$0xff]
        %v1463 = vld [vmem:[%s12] sm:$0xff]
        %v1464 = vld [vmem:[#allocation5] sm:$0xff]
        %v1465 = vld [vmem:[#allocation5 + $0x8] sm:$0xff]
        %v1466 = vld [vmem:[#allocation5 + $0x10] sm:$0xff]
        %v1467 = vld [vmem:[#allocation5 + $0x18] sm:$0xff]
        %v1468 = vld [vmem:[#allocation5 + $0x20] sm:$0xff]
        %v1469 = vld [vmem:[#allocation5 + $0x28] sm:$0xff]
        %v1470 = vld [vmem:[#allocation5 + $0x30] sm:$0xff]
        %v1471 = vld [vmem:[#allocation5 + $0x38] sm:$0xff]
        %v1472 = vld [vmem:[#allocation5 + $0x40] sm:$0xff]
        %v1473 = vld [vmem:[#allocation5 + $0x48] sm:$0xff]
        %v1474 = vld [vmem:[#allocation5 + $0x50] sm:$0xff]
        %v1475 = vld [vmem:[#allocation5 + $0x58] sm:$0xff]
        %v1476 = vld [vmem:[#allocation5 + $0x60] sm:$0xff]
        %v1477 = vld [vmem:[#allocation5 + $0x68] sm:$0xff]
        %v1478 = vld [vmem:[#allocation5 + $0x70] sm:$0xff]
        %v1479 = vld [vmem:[#allocation5 + $0x78] sm:$0xff]
        %v1480 = vld [vmem:[%s12 + $0x8] sm:$0xff]
        %vm1481 = vcmask 64512
        %v1483 = vsel %vm1481, %v1464, 0
        %v1486 = vsel %vm1481, %v1465, 0
        %v1489 = vsel %vm1481, %v1466, 0
        %v1492 = vsel %vm1481, %v1467, 0
        %v1495 = vsel %vm1481, %v1468, 0
        %v1498 = vsel %vm1481, %v1469, 0
        %v1501 = vsel %vm1481, %v1470, 0
        %v1504 = vsel %vm1481, %v1471, 0
        %v1507 = vsel %vm1481, %v1472, 0
        %v1510 = vsel %vm1481, %v1473, 0
        %v1513 = vsel %vm1481, %v1474, 0
        %v1516 = vsel %vm1481, %v1475, 0
        %v1519 = vsel %vm1481, %v1476, 0
        %v1522 = vsel %vm1481, %v1477, 0
        %v1525 = vsel %vm1481, %v1478, 0
        %v1528 = vsel %vm1481, %v1479, 0
        %1530 = vmatprep.subr.mxu0 0.0
        %1531 = vmatpush1.msra.mxu0 0.0
        %1532 = vmatprep.subr.mxu0 0.0
        %1533 = vmatpush1.msra.mxu0 0.0
        %1534 = vmatprep.subr.mxu0 0.0
        %1535 = vmatpush1.msra.mxu0 0.0
        %1536 = vmatprep.subr.mxu0 0.0
        %1537 = vmatpush1.msra.mxu0 0.0
        %1538 = vmatprep.subr.mxu0 0.0
        %1539 = vmatpush1.msra.mxu0 0.0
        %1540 = vmatprep.subr.mxu0 0.0
        %1541 = vmatpush1.msra.mxu0 0.0
        %1542 = vmatprep.subr.mxu0 0.0
        %1543 = vmatpush1.msra.mxu0 0.0
        %1544 = vmatprep.subr.mxu0 0.0
        %1545 = vmatpush1.msra.mxu0 0.0
        %1546 = vmatprep.subr.mxu0 0.0
        %1547 = vmatpush1.msra.mxu0 0.0
        %1548 = vmatprep.subr.mxu0 0.0
        %1549 = vmatpush1.msra.mxu0 0.0
        %1550 = vmatprep.subr.mxu0 0.0
        %1551 = vmatpush1.msra.mxu0 0.0
        %1552 = vmatprep.subr.mxu0 0.0
        %1553 = vmatpush1.msra.mxu0 0.0
        %1554 = vmatprep.subr.mxu0 0.0
        %1555 = vmatpush1.msra.mxu0 0.0
        %1556 = vmatprep.subr.mxu0 0.0
        %1557 = vmatpush1.msra.mxu0 0.0
        %1558 = vmatprep.subr.mxu0 0.0
        %1559 = vmatpush1.msra.mxu0 0.0
        %1560 = vmatprep.subr.mxu0 0.0
        %1561 = vmatpush1.msra.mxu0 %v1480
        %1562 = vmatprep.subr.mxu0 0.0
        %1563 = vmatpush2.msra.mxu0 0.0
        %1564 = vmatprep.subr.mxu0 0.0
        %1565 = vmatpush2.msra.mxu0 0.0
        %1566 = vmatprep.subr.mxu0 0.0
        %1567 = vmatpush2.msra.mxu0 0.0
        %1568 = vmatprep.subr.mxu0 0.0
        %1569 = vmatpush2.msra.mxu0 0.0
        %1570 = vmatprep.subr.mxu0 0.0
        %1571 = vmatpush2.msra.mxu0 0.0
        %1572 = vmatprep.subr.mxu0 0.0
        %1573 = vmatpush2.msra.mxu0 0.0
        %1574 = vmatprep.subr.mxu0 0.0
        %1575 = vmatpush2.msra.mxu0 0.0
        %1576 = vmatprep.subr.mxu0 0.0
        %1577 = vmatpush2.msra.mxu0 0.0
        %1578 = vmatprep.subr.mxu0 0.0
        %1579 = vmatpush2.msra.mxu0 0.0
        %1580 = vmatprep.subr.mxu0 0.0
        %1581 = vmatpush2.msra.mxu0 0.0
        %1582 = vmatprep.subr.mxu0 0.0
        %1583 = vmatpush2.msra.mxu0 0.0
        %1584 = vmatprep.subr.mxu0 0.0
        %1585 = vmatpush2.msra.mxu0 0.0
        %1586 = vmatprep.subr.mxu0 0.0
        %1587 = vmatpush2.msra.mxu0 0.0
        %1588 = vmatprep.subr.mxu0 0.0
        %1589 = vmatpush2.msra.mxu0 0.0
        %1590 = vmatprep.subr.mxu0 0.0
        %1591 = vmatpush2.msra.mxu0 0.0
        %1592 = vmatprep.subr.mxu0 0.0
        %1593 = vmatpush2.msra.mxu0 0.0
        %1594 = vmatprep.mubr.f32.mxu0 0.0
        %1595 = vmatmul.mubr.f32.gmra.mxu0 %v1483
        %v1596 = vpop.f32.mrf.mxu0
        %v1597 = vadd.f32 0.0, %v1596
        %v1598 = vpop.f32.mrf.mxu0
        %1599 = vmatprep.mubr.f32.mxu0 0.0
        %1600 = vmatmul.mubr.f32.gmra.mxu0 %v1486
        %v1601 = vpop.f32.mrf.mxu0
        %v1602 = vadd.f32 0.0, %v1601
        %v1603 = vpop.f32.mrf.mxu0
        %1604 = vmatprep.mubr.f32.mxu0 0.0
        %1605 = vmatmul.mubr.f32.gmra.mxu0 %v1489
        %v1606 = vpop.f32.mrf.mxu0
        %v1607 = vadd.f32 0.0, %v1606
        %v1608 = vpop.f32.mrf.mxu0
        %1609 = vmatprep.mubr.f32.mxu0 0.0
        %1610 = vmatmul.mubr.f32.gmra.mxu0 %v1492
        %v1611 = vpop.f32.mrf.mxu0
        %v1612 = vadd.f32 0.0, %v1611
        %v1613 = vpop.f32.mrf.mxu0
        %1614 = vmatprep.mubr.f32.mxu0 0.0
        %1615 = vmatmul.mubr.f32.gmra.mxu0 %v1495
        %v1616 = vpop.f32.mrf.mxu0
        %v1617 = vadd.f32 0.0, %v1616
        %v1618 = vpop.f32.mrf.mxu0
        %1619 = vmatprep.mubr.f32.mxu0 0.0
        %1620 = vmatmul.mubr.f32.gmra.mxu0 %v1498
        %v1621 = vpop.f32.mrf.mxu0
        %v1622 = vadd.f32 0.0, %v1621
        %v1623 = vpop.f32.mrf.mxu0
        %1624 = vmatprep.mubr.f32.mxu0 0.0
        %1625 = vmatmul.mubr.f32.gmra.mxu0 %v1501
        %v1626 = vpop.f32.mrf.mxu0
        %v1627 = vadd.f32 0.0, %v1626
        %v1628 = vpop.f32.mrf.mxu0
        %1629 = vmatprep.mubr.f32.mxu0 0.0
        %1630 = vmatmul.mubr.f32.gmra.mxu0 %v1504
        %v1631 = vpop.f32.mrf.mxu0
        %v1632 = vadd.f32 0.0, %v1631
        %v1633 = vpop.f32.mrf.mxu0
        %1634 = vmatprep.mubr.f32.mxu0 0.0
        %1635 = vmatmul.mubr.f32.gmra.mxu0 %v1507
        %v1636 = vpop.f32.mrf.mxu0
        %v1637 = vadd.f32 0.0, %v1636
        %v1638 = vpop.f32.mrf.mxu0
        %1639 = vmatprep.mubr.f32.mxu0 0.0
        %1640 = vmatmul.mubr.f32.gmra.mxu0 %v1510
        %v1641 = vpop.f32.mrf.mxu0
        %v1642 = vadd.f32 0.0, %v1641
        %v1643 = vpop.f32.mrf.mxu0
        %1644 = vmatprep.mubr.f32.mxu0 0.0
        %1645 = vmatmul.mubr.f32.gmra.mxu0 %v1513
        %v1646 = vpop.f32.mrf.mxu0
        %v1647 = vadd.f32 0.0, %v1646
        %v1648 = vpop.f32.mrf.mxu0
        %1649 = vmatprep.mubr.f32.mxu0 0.0
        %1650 = vmatmul.mubr.f32.gmra.mxu0 %v1516
        %v1651 = vpop.f32.mrf.mxu0
        %v1652 = vadd.f32 0.0, %v1651
        %v1653 = vpop.f32.mrf.mxu0
        %1654 = vmatprep.mubr.f32.mxu0 0.0
        %1655 = vmatmul.mubr.f32.gmra.mxu0 %v1519
        %v1656 = vpop.f32.mrf.mxu0
        %v1657 = vadd.f32 0.0, %v1656
        %v1658 = vpop.f32.mrf.mxu0
        %1659 = vmatprep.mubr.f32.mxu0 0.0
        %1660 = vmatmul.mubr.f32.gmra.mxu0 %v1522
        %v1661 = vpop.f32.mrf.mxu0
        %v1662 = vadd.f32 0.0, %v1661
        %v1663 = vpop.f32.mrf.mxu0
        %1664 = vmatprep.mubr.f32.mxu0 0.0
        %1665 = vmatmul.mubr.f32.gmra.mxu0 %v1525
        %v1666 = vpop.f32.mrf.mxu0
        %v1667 = vadd.f32 0.0, %v1666
        %v1668 = vpop.f32.mrf.mxu0
        %1669 = vmatprep.mubr.f32.mxu0 0.0
        %1670 = vmatmul.mubr.f32.gmra.mxu0 %v1528
        %v1671 = vpop.f32.mrf.mxu0
        %v1672 = vadd.f32 0.0, %v1671
        %v1673 = vpop.f32.mrf.mxu0
        %1674 = vdwg.mxu0
        %v1676 = vsel %vm1481, %v1447, 0
        %v1679 = vsel %vm1481, %v1448, 0
        %v1682 = vsel %vm1481, %v1449, 0
        %v1685 = vsel %vm1481, %v1450, 0
        %v1688 = vsel %vm1481, %v1451, 0
        %v1691 = vsel %vm1481, %v1452, 0
        %v1694 = vsel %vm1481, %v1453, 0
        %v1697 = vsel %vm1481, %v1454, 0
        %v1700 = vsel %vm1481, %v1455, 0
        %v1703 = vsel %vm1481, %v1456, 0
        %v1706 = vsel %vm1481, %v1457, 0
        %v1709 = vsel %vm1481, %v1458, 0
        %v1712 = vsel %vm1481, %v1459, 0
        %v1715 = vsel %vm1481, %v1460, 0
        %v1718 = vsel %vm1481, %v1461, 0
        %v1721 = vsel %vm1481, %v1462, 0
        %1723 = vmatprep.subr.mxu0 0.0
        %1724 = vmatpush1.msra.mxu0 0.0
        %1725 = vmatprep.subr.mxu0 0.0
        %1726 = vmatpush1.msra.mxu0 0.0
        %1727 = vmatprep.subr.mxu0 0.0
        %1728 = vmatpush1.msra.mxu0 0.0
        %1729 = vmatprep.subr.mxu0 0.0
        %1730 = vmatpush1.msra.mxu0 0.0
        %1731 = vmatprep.subr.mxu0 0.0
        %1732 = vmatpush1.msra.mxu0 0.0
        %1733 = vmatprep.subr.mxu0 0.0
        %1734 = vmatpush1.msra.mxu0 0.0
        %1735 = vmatprep.subr.mxu0 0.0
        %1736 = vmatpush1.msra.mxu0 0.0
        %1737 = vmatprep.subr.mxu0 0.0
        %1738 = vmatpush1.msra.mxu0 0.0
        %1739 = vmatprep.subr.mxu0 0.0
        %1740 = vmatpush1.msra.mxu0 0.0
        %1741 = vmatprep.subr.mxu0 0.0
        %1742 = vmatpush1.msra.mxu0 0.0
        %1743 = vmatprep.subr.mxu0 0.0
        %1744 = vmatpush1.msra.mxu0 0.0
        %1745 = vmatprep.subr.mxu0 0.0
        %1746 = vmatpush1.msra.mxu0 0.0
        %1747 = vmatprep.subr.mxu0 0.0
        %1748 = vmatpush1.msra.mxu0 0.0
        %1749 = vmatprep.subr.mxu0 0.0
        %1750 = vmatpush1.msra.mxu0 0.0
        %1751 = vmatprep.subr.mxu0 0.0
        %1752 = vmatpush1.msra.mxu0 0.0
        %1753 = vmatprep.subr.mxu0 0.0
        %1754 = vmatpush1.msra.mxu0 %v1463
        %1755 = vmatprep.subr.mxu0 0.0
        %1756 = vmatpush2.msra.mxu0 0.0
        %1757 = vmatprep.subr.mxu0 0.0
        %1758 = vmatpush2.msra.mxu0 0.0
        %1759 = vmatprep.subr.mxu0 0.0
        %1760 = vmatpush2.msra.mxu0 0.0
        %1761 = vmatprep.subr.mxu0 0.0
        %1762 = vmatpush2.msra.mxu0 0.0
        %1763 = vmatprep.subr.mxu0 0.0
        %1764 = vmatpush2.msra.mxu0 0.0
        %1765 = vmatprep.subr.mxu0 0.0
        %1766 = vmatpush2.msra.mxu0 0.0
        %1767 = vmatprep.subr.mxu0 0.0
        %1768 = vmatpush2.msra.mxu0 0.0
        %1769 = vmatprep.subr.mxu0 0.0
        %1770 = vmatpush2.msra.mxu0 0.0
        %1771 = vmatprep.subr.mxu0 0.0
        %1772 = vmatpush2.msra.mxu0 0.0
        %1773 = vmatprep.subr.mxu0 0.0
        %1774 = vmatpush2.msra.mxu0 0.0
        %1775 = vmatprep.subr.mxu0 0.0
        %1776 = vmatpush2.msra.mxu0 0.0
        %1777 = vmatprep.subr.mxu0 0.0
        %1778 = vmatpush2.msra.mxu0 0.0
        %1779 = vmatprep.subr.mxu0 0.0
        %1780 = vmatpush2.msra.mxu0 0.0
        %1781 = vmatprep.subr.mxu0 0.0
        %1782 = vmatpush2.msra.mxu0 0.0
        %1783 = vmatprep.subr.mxu0 0.0
        %1784 = vmatpush2.msra.mxu0 0.0
        %1785 = vmatprep.subr.mxu0 0.0
        %1786 = vmatpush2.msra.mxu0 0.0
        %1787 = vmatprep.mubr.f32.mxu0 0.0
        %1788 = vmatmul.mubr.f32.gmra.mxu0 %v1676
        %v1789 = vpop.f32.mrf.mxu0
        %v1790 = vadd.f32 %v1597, %v1789
        %v1791 = vpop.f32.mrf.mxu0
        %1792 = vmatprep.mubr.f32.mxu0 0.0
        %1793 = vmatmul.mubr.f32.gmra.mxu0 %v1679
        %v1794 = vpop.f32.mrf.mxu0
        %v1795 = vadd.f32 %v1602, %v1794
        %v1796 = vpop.f32.mrf.mxu0
        %1797 = vmatprep.mubr.f32.mxu0 0.0
        %1798 = vmatmul.mubr.f32.gmra.mxu0 %v1682
        %v1799 = vpop.f32.mrf.mxu0
        %v1800 = vadd.f32 %v1607, %v1799
        %v1801 = vpop.f32.mrf.mxu0
        %1802 = vmatprep.mubr.f32.mxu0 0.0
        %1803 = vmatmul.mubr.f32.gmra.mxu0 %v1685
        %v1804 = vpop.f32.mrf.mxu0
        %v1805 = vadd.f32 %v1612, %v1804
        %v1806 = vpop.f32.mrf.mxu0
        %1807 = vmatprep.mubr.f32.mxu0 0.0
        %1808 = vmatmul.mubr.f32.gmra.mxu0 %v1688
        %v1809 = vpop.f32.mrf.mxu0
        %v1810 = vadd.f32 %v1617, %v1809
        %v1811 = vpop.f32.mrf.mxu0
        %1812 = vmatprep.mubr.f32.mxu0 0.0
        %1813 = vmatmul.mubr.f32.gmra.mxu0 %v1691
        %v1814 = vpop.f32.mrf.mxu0
        %v1815 = vadd.f32 %v1622, %v1814
        %v1816 = vpop.f32.mrf.mxu0
        %1817 = vmatprep.mubr.f32.mxu0 0.0
        %1818 = vmatmul.mubr.f32.gmra.mxu0 %v1694
        %v1819 = vpop.f32.mrf.mxu0
        %v1820 = vadd.f32 %v1627, %v1819
        %v1821 = vpop.f32.mrf.mxu0
        %1822 = vmatprep.mubr.f32.mxu0 0.0
        %1823 = vmatmul.mubr.f32.gmra.mxu0 %v1697
        %v1824 = vpop.f32.mrf.mxu0
        %v1825 = vadd.f32 %v1632, %v1824
        %v1826 = vpop.f32.mrf.mxu0
        %1827 = vmatprep.mubr.f32.mxu0 0.0
        %1828 = vmatmul.mubr.f32.gmra.mxu0 %v1700
        %v1829 = vpop.f32.mrf.mxu0
        %v1830 = vadd.f32 %v1637, %v1829
        %v1831 = vpop.f32.mrf.mxu0
        %1832 = vmatprep.mubr.f32.mxu0 0.0
        %1833 = vmatmul.mubr.f32.gmra.mxu0 %v1703
        %v1834 = vpop.f32.mrf.mxu0
        %v1835 = vadd.f32 %v1642, %v1834
        %v1836 = vpop.f32.mrf.mxu0
        %1837 = vmatprep.mubr.f32.mxu0 0.0
        %1838 = vmatmul.mubr.f32.gmra.mxu0 %v1706
        %v1839 = vpop.f32.mrf.mxu0
        %v1840 = vadd.f32 %v1647, %v1839
        %v1841 = vpop.f32.mrf.mxu0
        %1842 = vmatprep.mubr.f32.mxu0 0.0
        %1843 = vmatmul.mubr.f32.gmra.mxu0 %v1709
        %v1844 = vpop.f32.mrf.mxu0
        %v1845 = vadd.f32 %v1652, %v1844
        %v1846 = vpop.f32.mrf.mxu0
        %1847 = vmatprep.mubr.f32.mxu0 0.0
        %1848 = vmatmul.mubr.f32.gmra.mxu0 %v1712
        %v1849 = vpop.f32.mrf.mxu0
        %v1850 = vadd.f32 %v1657, %v1849
        %v1851 = vpop.f32.mrf.mxu0
        %1852 = vmatprep.mubr.f32.mxu0 0.0
        %1853 = vmatmul.mubr.f32.gmra.mxu0 %v1715
        %v1854 = vpop.f32.mrf.mxu0
        %v1855 = vadd.f32 %v1662, %v1854
        %v1856 = vpop.f32.mrf.mxu0
        %1857 = vmatprep.mubr.f32.mxu0 0.0
        %1858 = vmatmul.mubr.f32.gmra.mxu0 %v1718
        %v1859 = vpop.f32.mrf.mxu0
        %v1860 = vadd.f32 %v1667, %v1859
        %v1861 = vpop.f32.mrf.mxu0
        %1862 = vmatprep.mubr.f32.mxu0 0.0
        %1863 = vmatmul.mubr.f32.gmra.mxu0 %v1721
        %v1864 = vpop.f32.mrf.mxu0
        %v1865 = vadd.f32 %v1672, %v1864
        %v1866 = vpop.f32.mrf.mxu0
        %1867 = vdwg.mxu0
        %v1868 = vld [vmem:[%s13] sm:$0x1]
        %v1870 = vlaneseq
        %v1871 = vshrl.u32 %v1870, 7
        %v1872 = vsub.s32 0, %v1871
        %v1873 = vrot.slane %v1868, %v1872
        %v1875 = vadd.f32 %v1790, %v1873
        %v1876 = vadd.f32 %v1795, %v1873
        %v1877 = vadd.f32 %v1800, %v1873
        %v1878 = vadd.f32 %v1805, %v1873
        %v1879 = vadd.f32 %v1810, %v1873
        %v1880 = vadd.f32 %v1815, %v1873
        %v1881 = vadd.f32 %v1820, %v1873
        %v1882 = vadd.f32 %v1825, %v1873
        %v1883 = vadd.f32 %v1830, %v1873
        %v1884 = vadd.f32 %v1835, %v1873
        %v1885 = vadd.f32 %v1840, %v1873
        %v1886 = vadd.f32 %v1845, %v1873
        %v1887 = vadd.f32 %v1850, %v1873
        %v1888 = vadd.f32 %v1855, %v1873
        %v1889 = vadd.f32 %v1860, %v1873
        %v1890 = vadd.f32 %v1865, %v1873
        %1891 = vxpose.xlu0.b32.start [1/16] %v1875, 128
        %1892 = vxpose.xlu0.b32.cont [2/16] %v1876, 128
        %1893 = vxpose.xlu0.b32.cont [3/16] %v1877, 128
        %1894 = vxpose.xlu0.b32.cont [4/16] %v1878, 128
        %1895 = vxpose.xlu0.b32.cont [5/16] %v1879, 128
        %1896 = vxpose.xlu0.b32.cont [6/16] %v1880, 128
        %1897 = vxpose.xlu0.b32.cont [7/16] %v1881, 128
        %1898 = vxpose.xlu0.b32.cont [8/16] %v1882, 128
        %1899 = vxpose.xlu0.b32.cont [9/16] %v1883, 128
        %1900 = vxpose.xlu0.b32.cont [10/16] %v1884, 128
        %1901 = vxpose.xlu0.b32.cont [11/16] %v1885, 128
        %1902 = vxpose.xlu0.b32.cont [12/16] %v1886, 128
        %1903 = vxpose.xlu0.b32.cont [13/16] %v1887, 128
        %1904 = vxpose.xlu0.b32.cont [14/16] %v1888, 128
        %1905 = vxpose.xlu0.b32.cont [15/16] %v1889, 128
        %1906 = vxpose.xlu0.b32.end [16/16] %v1890, 128
        %v1907 = vpop.trf.xlu0
        %v1908 = vpop.trf.xlu0
        %v1909 = vpop.trf.xlu0
        %v1910 = vpop.trf.xlu0
        %v1911 = vpop.trf.xlu0
        %v1912 = vpop.trf.xlu0
        %v1913 = vpop.trf.xlu0
        %v1914 = vpop.trf.xlu0
        %v1915 = vpop.trf.xlu0
        %v1916 = vpop.trf.xlu0
        %v1917 = vpop.trf.xlu0
        %v1918 = vpop.trf.xlu0
        %v1919 = vpop.trf.xlu0
        %v1920 = vpop.trf.xlu0
        %v1921 = vpop.trf.xlu0
        %v1922 = vpop.trf.xlu0
        %1923 = vst [vmem:[%s505] sm:$0xff] %v1907
        %s1924 = sand.u32 %s321, 1
        %s1925 = scalar_lea.sflag [#allocation10], %s1924
        %s1926 = sand.u32 %s321, 1
        %s1927 = smul.addr %s1926, 8
        %s1928 = scalar_lea.vmem [#allocation17], %s1927
        // Predicated region
        $region107: #{tpu_custom_call.1} parent=71 // pred_check
          %p1929 = pneg %p331
        $region108: #{tpu_custom_call.1} parent=71 // pred_check_branch
          %1931 = sbr.rel (%p1929) target = $region110
        $region109: #{tpu_custom_call.1} parent=71 // pred_region
          %s1933 = ssub.s32 128, 128
          %1934 = vsyncadd %s1925, %s1933
          %s1935 = smul.addr %s35, 128
          %s1936 = scalar_lea.hbm %s14, %s1935
          %s1938 = sshll.u32 %s1928, 4
          %s1939 = int_to_ptr.vmem [resolvable:$true] %s1938
          %1941 = dma.vmem_to_hbm [thread:$0]  %s1939, 128, %s1936, %s1925
        $region110: #{tpu_custom_call.1} parent=71 // pred_fallthru
          _
      $region72: #{tpu_custom_call.1} parent=5 // pred_fallthru
        _
      %p1942 = scmp.le.s32.totalorder 2, %s30
      // Predicated region
      $region111: #{tpu_custom_call.1} parent=5 // pred_check
        %p1943 = pneg %p1942
      $region112: #{tpu_custom_call.1} parent=5 // pred_check_branch
        %1945 = sbr.rel (%p1943) target = $region114
      $region113: #{tpu_custom_call.1} parent=5 // pred_region
        %s1946 = ssub.s32 %s30, 2
        // Predicated region
        $region115: #{tpu_custom_call.1} parent=113 // pred_check
          %p1947 = pneg %p337
        $region116: #{tpu_custom_call.1} parent=113 // pred_check_branch
          %1949 = sbr.rel (%p1947) target = $region118
        $region117: #{tpu_custom_call.1} parent=113 // pred_region
          %s1950 = sand.u32 %s322, 1
          %s1951 = scalar_lea.sflag [#allocation10], %s1950
          %s1952 = sand.u32 %s322, 1
          %s1953 = smul.addr %s1952, 8
          %s1954 = scalar_lea.vmem [#allocation17], %s1953
          %1955 = dma.done %s1951, 128
        $region118: #{tpu_custom_call.1} parent=113 // pred_fallthru
          _
      $region114: #{tpu_custom_call.1} parent=5 // pred_fallthru
        _
    $region6: #{tpu_custom_call.1} parent=1 // loop_footer
      %s34 = sadd.s32 1, %s30
    $region7: #{tpu_custom_call.1} parent=1 // loop_footer_branch
      %29 = sbr.rel target = $region3
    $region8: #{tpu_custom_call.1} parent=1 // loop_exit
      _
    %1956 = vsyncpa [#allocation9], 1
    %s1957 = scalar_lea.sflag [#allocation9], 1
    %1958 = vsyncpa %s1957, 1
    %1959 = vsyncpa [#allocation12], 1
    %1960 = vsyncpa [#allocation15], 1
    %1961 = vsyncpa [#allocation10], 1
    %s1962 = scalar_lea.sflag [#allocation10], 1
    %1963 = vsyncpa %s1962, 1

</llo_original>
